<compile_context>
chip_gen: v7x
topology: tpu7x:2x2x1
jax: 0.10.0
libtpu: 0.0.40
codegen_flags: <defaults>
</compile_context>

<pallas_src>
import functools
import math

import jax
import jax.numpy as jnp
import numpy as np
from jax import lax
from jax.experimental import pallas as pl
from jax.experimental.pallas import tpu as pltpu

WINDOW_SIZE = 11
SIGMA = 1.5


def _gaussian_1d(window_size, sigma=SIGMA):
    g = [math.exp(-((i - window_size // 2) ** 2) / (2.0 * sigma ** 2))
         for i in range(window_size)]
    s = sum(g)
    return [v / s for v in g]


def _round_up(x, m):
    return (x + m - 1) // m * m


def _ssim_kernel(cc_ref, wband_ref, hband_ref, x1_ref, x2_ref, out_ref, *,
                 Bt, H, W, B):
    """One grid step = Bt (zero-padded) image planes packed along sublanes."""
    g = pl.program_id(0)
    c1 = cc_ref[0]                              # SMEM scalars
    c2 = cc_ref[1]

    wband = wband_ref[...]                      # (Wp, W)            f32
    hband = hband_ref[...]                      # (Bt*H, Bt*Hp_pad)  f32, block-diag
    x1 = x1_ref[...].astype(jnp.float32)        # (Bt*Hp_pad, Wp)
    x2 = x2_ref[...].astype(jnp.float32)

    def gauss_filter(x2d):
        # Separable Gaussian as two MXU matmuls (f32 operands, f32 accumulate).
        rows = jnp.dot(x2d, wband, preferred_element_type=jnp.float32)
        return jnp.dot(hband, rows, preferred_element_type=jnp.float32)

    mu1 = gauss_filter(x1)
    mu2 = gauss_filter(x2)
    e11 = gauss_filter(x1 * x1)
    e22 = gauss_filter(x2 * x2)
    e12 = gauss_filter(x1 * x2)

    mu1_sq = mu1 * mu1
    mu2_sq = mu2 * mu2
    mu1_mu2 = mu1 * mu2
    sigma1_sq = e11 - mu1_sq
    sigma2_sq = e22 - mu2_sq
    sigma12 = e12 - mu1_mu2

    v1 = 2.0 * sigma12 + c2
    v2 = sigma1_sq + sigma2_sq + c2
    ssim_map = (2.0 * mu1_mu2 + c1) * v1 / ((mu1_sq + mu2_sq + c1) * v2)

    # Mask the rows that belong to batch-padding (fake) planes before reducing.
    row = lax.broadcasted_iota(jnp.int32, ssim_map.shape, 0)
    valid = (g * (Bt * H) + row) < (B * H)
    block_sum = jnp.sum(jnp.where(valid, ssim_map, 0.0))

    out_ref[...] = jnp.broadcast_to(block_sum, out_ref.shape)


def ssim_loss(img1, img2, window_size=WINDOW_SIZE, val_range=None):
    """Returns 1 - mean(SSIM map), matching SSIM.forward (size_average=True)."""
    N, C, H, W = img1.shape
    ws = min(window_size, H, W)          # same `real_size` rule as the torch code
    pad = ws // 2
    w1d = _gaussian_1d(ws)

    # Dynamic-range constants (same data-dependent rule as the PyTorch code).
    if val_range is None:
        max_val = jnp.where(jnp.max(img1) > 128, 255.0, 1.0)
        min_val = jnp.where(jnp.min(img1) < -0.5, -1.0, 0.0)
        l = max_val - min_val
    else:
        l = jnp.float32(val_range)
    cc = jnp.stack([(0.01 * l) ** 2, (0.03 * l) ** 2]).astype(jnp.float32)

    B = N * C
    Hp = H + 2 * pad
    Wp = W + 2 * pad
    Hp_pad = _round_up(Hp, 8)            # sublane-aligned rows per packed plane

    # How many planes to pack per grid step (bounded by input-block bytes,
    # block-diagonal band size, and the available batch).
    itemsize = jnp.dtype(img1.dtype).itemsize
    in_budget = 2 * 1024 * 1024
    band_budget = 2 * 1024 * 1024
    bt_in = max(1, in_budget // (Hp_pad * Wp * itemsize))
    bt_band = max(1, int(math.floor(math.sqrt(band_budget / (H * Hp_pad * 4.0)))))
    Bt = int(max(1, min(bt_in, bt_band, B, 16)))
    B_pad = _round_up(B, Bt)
    num_steps = B_pad // Bt
    # TODO(synk): for very large single planes (Bt == 1, e.g. 1080x1920) add an
    # H-strip grid axis with a 2*pad halo to bound the per-step VMEM working set.

    # Band matrices for the separable Gaussian (constants, built once).
    wband_np = np.zeros((Wp, W), np.float32)
    for q in range(W):
        for dx in range(ws):
            wband_np[q + dx, q] = w1d[dx]
    hband1 = np.zeros((H, Hp_pad), np.float32)
    for h in range(H):
        for dy in range(ws):
            hband1[h, h + dy] = w1d[dy]
    hband_np = np.zeros((Bt * H, Bt * Hp_pad), np.float32)
    for b in range(Bt):
        hband_np[b * H:(b + 1) * H, b * Hp_pad:(b + 1) * Hp_pad] = hband1
    wband = jnp.asarray(wband_np)
    hband = jnp.asarray(hband_np)

    # Pack planes: native dtype, zero spatial pad, sublane-aligned plane height.
    x1 = img1.reshape(B, H, W)
    x2 = img2.reshape(B, H, W)
    pad_cfg = ((0, B_pad - B), (pad, Hp_pad - H - pad), (pad, pad))
    x1p = jnp.pad(x1, pad_cfg).reshape(B_pad * Hp_pad, Wp)
    x2p = jnp.pad(x2, pad_cfg).reshape(B_pad * Hp_pad, Wp)

    # Explicit VMEM budget from the block sizes (double-buffered inputs, bands,
    # f32 working set) with headroom.
    in_block = Bt * Hp_pad * Wp * itemsize
    f32_wide = Bt * Hp_pad * Wp * 4
    f32_out = Bt * H * W * 4
    vmem_est = (4 * in_block + 2 * 4 * (wband_np.size + hband_np.size)
                + 8 * f32_wide + 16 * f32_out + (2 << 20))
    vmem_limit = int(min(max(vmem_est, 8 << 20), 48 << 20))

    kernel = functools.partial(_ssim_kernel, Bt=Bt, H=H, W=W, B=B)

    out = pl.pallas_call(
        kernel,
        out_shape=jax.ShapeDtypeStruct((num_steps * 8, 128), jnp.float32),
        grid=(num_steps,),
        in_specs=[
            pl.BlockSpec(memory_space=pltpu.MemorySpace.SMEM),      # c1, c2
            pl.BlockSpec((Wp, W), lambda g: (0, 0)),                # row-pass band
            pl.BlockSpec((Bt * H, Bt * Hp_pad), lambda g: (0, 0)),  # col-pass band
            pl.BlockSpec((Bt * Hp_pad, Wp), lambda g: (g, 0)),      # img1 planes
            pl.BlockSpec((Bt * Hp_pad, Wp), lambda g: (g, 0)),      # img2 planes
        ],
        out_specs=pl.BlockSpec((8, 128), lambda g: (g, 0)),         # per-step sum
        compiler_params=pltpu.CompilerParams(
            dimension_semantics=("parallel",),
            vmem_limit_bytes=vmem_limit),
    )(cc, wband, hband, x1p, x2p)

    block_sums = out.reshape(num_steps, 8, 128)[:, 0, 0]
    mean_ssim = jnp.sum(block_sums) / (B * H * W)
    return 1.0 - mean_ssim


def _ssim_loss_ref(img1, img2, window_size=WINDOW_SIZE):
    """Pure-JAX reference (depthwise conv with the full 2D Gaussian window)."""
    N, C, H, W = img1.shape
    ws = min(window_size, H, W)
    pad = ws // 2
    w1d = jnp.asarray(_gaussian_1d(ws), jnp.float32)
    w2d = jnp.outer(w1d, w1d)
    win = jnp.broadcast_to(w2d, (C, 1, ws, ws))

    def conv(x):
        return lax.conv_general_dilated(
            x.astype(jnp.float32), win, window_strides=(1, 1),
            padding=[(pad, pad), (pad, pad)],
            dimension_numbers=("NCHW", "OIHW", "NCHW"),
            feature_group_count=C,
            precision=lax.Precision.HIGHEST)

    max_val = jnp.where(jnp.max(img1) > 128, 255.0, 1.0)
    min_val = jnp.where(jnp.min(img1) < -0.5, -1.0, 0.0)
    l = max_val - min_val
    c1 = (0.01 * l) ** 2
    c2 = (0.03 * l) ** 2

    mu1, mu2 = conv(img1), conv(img2)
    mu1_sq, mu2_sq, mu1_mu2 = mu1 * mu1, mu2 * mu2, mu1 * mu2
    s1 = conv(img1 * img1) - mu1_sq
    s2 = conv(img2 * img2) - mu2_sq
    s12 = conv(img1 * img2) - mu1_mu2
    v1 = 2.0 * s12 + c2
    v2 = s1 + s2 + c2
    ssim_map = (2 * mu1_mu2 + c1) * v1 / ((mu1_sq + mu2_sq + c1) * v2)
    return 1.0 - jnp.mean(ssim_map)


if __name__ == "__main__":
    key = jax.random.PRNGKey(0)
    k1, k2 = jax.random.split(key)
    N, C, H, W = 2, 3, 16, 16
    img1 = jax.random.uniform(k1, (N, C, H, W), jnp.float32)
    img2 = jax.random.uniform(k2, (N, C, H, W), jnp.float32)

    loss = jax.block_until_ready(ssim_loss(img1, img2))
    ref = jax.block_until_ready(_ssim_loss_ref(img1, img2))

    assert jnp.allclose(loss, ref, rtol=1e-3, atol=1e-4), (loss, ref)
    print("KERNEL_OK")
</pallas_src>

<mosaic_0001>
module attributes {stable_mosaic.version = 11 : i64} {
  func.func @_ssim_kernel(%arg0: i32, %arg1: memref<2xf32, #tpu.memory_space<smem>>, %arg2: memref<26x16xf32, #tpu.memory_space<vmem>>, %arg3: memref<96x192xf32, #tpu.memory_space<vmem>>, %arg4: memref<192x26xf32, #tpu.memory_space<vmem>>, %arg5: memref<192x26xf32, #tpu.memory_space<vmem>>, %arg6: memref<8x128xf32, #tpu.memory_space<vmem>>) attributes {dimension_semantics = [#tpu.dimension_semantics<parallel>], iteration_bounds = array<i64: 1>, scalar_prefetch = 0 : i64, scratch_operands = 0 : i64, tpu.core_type = #tpu.core_type<tc>, window_params = [{transform_indices = @transform_0, window_bounds = array<i64: 2>}, {pipeline_mode = #tpu.pipeline_mode<synchronous>, transform_indices = @transform_1, window_bounds = array<i64: 26, 16>}, {pipeline_mode = #tpu.pipeline_mode<synchronous>, transform_indices = @transform_2, window_bounds = array<i64: 96, 192>}, {transform_indices = @transform_3, window_bounds = array<i64: 192, 26>}, {transform_indices = @transform_4, window_bounds = array<i64: 192, 26>}, {transform_indices = @transform_5, window_bounds = array<i64: 8, 128>}]} {
    %c0 = arith.constant 0 : index
    %0 = memref.load %arg1[%c0] : memref<2xf32, #tpu.memory_space<smem>>
    %c1 = arith.constant 1 : index
    %1 = memref.load %arg1[%c1] : memref<2xf32, #tpu.memory_space<smem>>
    %c0_0 = arith.constant 0 : index
    %c0_1 = arith.constant 0 : index
    %2 = vector.load %arg2[%c0_0, %c0_1] : memref<26x16xf32, #tpu.memory_space<vmem>>, vector<26x16xf32>
    %c0_2 = arith.constant 0 : index
    %c0_3 = arith.constant 0 : index
    %3 = vector.load %arg3[%c0_2, %c0_3] : memref<96x192xf32, #tpu.memory_space<vmem>>, vector<96x192xf32>
    %c0_4 = arith.constant 0 : index
    %c0_5 = arith.constant 0 : index
    %4 = vector.load %arg4[%c0_4, %c0_5] : memref<192x26xf32, #tpu.memory_space<vmem>>, vector<192x26xf32>
    %c0_6 = arith.constant 0 : index
    %c0_7 = arith.constant 0 : index
    %5 = vector.load %arg5[%c0_6, %c0_7] : memref<192x26xf32, #tpu.memory_space<vmem>>, vector<192x26xf32>
    %cst = arith.constant dense<0.000000e+00> : vector<192x16xf32>
    %6 = tpu.matmul %4, %2, %cst {dimension_numbers = #tpu.dot_dimension_numbers<[1], [0], [0], [1], [0, 0, 1, 1], [], []>} : vector<192x26xf32>, vector<26x16xf32>, vector<192x16xf32> -> vector<192x16xf32>
    %cst_8 = arith.constant dense<0.000000e+00> : vector<96x16xf32>
    %7 = tpu.matmul %3, %6, %cst_8 {dimension_numbers = #tpu.dot_dimension_numbers<[1], [0], [0], [1], [0, 0, 1, 1], [], []>} : vector<96x192xf32>, vector<192x16xf32>, vector<96x16xf32> -> vector<96x16xf32>
    %cst_9 = arith.constant dense<0.000000e+00> : vector<192x16xf32>
    %8 = tpu.matmul %5, %2, %cst_9 {dimension_numbers = #tpu.dot_dimension_numbers<[1], [0], [0], [1], [0, 0, 1, 1], [], []>} : vector<192x26xf32>, vector<26x16xf32>, vector<192x16xf32> -> vector<192x16xf32>
    %cst_10 = arith.constant dense<0.000000e+00> : vector<96x16xf32>
    %9 = tpu.matmul %3, %8, %cst_10 {dimension_numbers = #tpu.dot_dimension_numbers<[1], [0], [0], [1], [0, 0, 1, 1], [], []>} : vector<96x192xf32>, vector<192x16xf32>, vector<96x16xf32> -> vector<96x16xf32>
    %10 = arith.mulf %4, %4 : vector<192x26xf32>
    %cst_11 = arith.constant dense<0.000000e+00> : vector<192x16xf32>
    %11 = tpu.matmul %10, %2, %cst_11 {dimension_numbers = #tpu.dot_dimension_numbers<[1], [0], [0], [1], [0, 0, 1, 1], [], []>} : vector<192x26xf32>, vector<26x16xf32>, vector<192x16xf32> -> vector<192x16xf32>
    %cst_12 = arith.constant dense<0.000000e+00> : vector<96x16xf32>
    %12 = tpu.matmul %3, %11, %cst_12 {dimension_numbers = #tpu.dot_dimension_numbers<[1], [0], [0], [1], [0, 0, 1, 1], [], []>} : vector<96x192xf32>, vector<192x16xf32>, vector<96x16xf32> -> vector<96x16xf32>
    %13 = arith.mulf %5, %5 : vector<192x26xf32>
    %cst_13 = arith.constant dense<0.000000e+00> : vector<192x16xf32>
    %14 = tpu.matmul %13, %2, %cst_13 {dimension_numbers = #tpu.dot_dimension_numbers<[1], [0], [0], [1], [0, 0, 1, 1], [], []>} : vector<192x26xf32>, vector<26x16xf32>, vector<192x16xf32> -> vector<192x16xf32>
    %cst_14 = arith.constant dense<0.000000e+00> : vector<96x16xf32>
    %15 = tpu.matmul %3, %14, %cst_14 {dimension_numbers = #tpu.dot_dimension_numbers<[1], [0], [0], [1], [0, 0, 1, 1], [], []>} : vector<96x192xf32>, vector<192x16xf32>, vector<96x16xf32> -> vector<96x16xf32>
    %16 = arith.mulf %4, %5 : vector<192x26xf32>
    %cst_15 = arith.constant dense<0.000000e+00> : vector<192x16xf32>
    %17 = tpu.matmul %16, %2, %cst_15 {dimension_numbers = #tpu.dot_dimension_numbers<[1], [0], [0], [1], [0, 0, 1, 1], [], []>} : vector<192x26xf32>, vector<26x16xf32>, vector<192x16xf32> -> vector<192x16xf32>
    %cst_16 = arith.constant dense<0.000000e+00> : vector<96x16xf32>
    %18 = tpu.matmul %3, %17, %cst_16 {dimension_numbers = #tpu.dot_dimension_numbers<[1], [0], [0], [1], [0, 0, 1, 1], [], []>} : vector<96x192xf32>, vector<192x16xf32>, vector<96x16xf32> -> vector<96x16xf32>
    %19 = arith.mulf %7, %7 : vector<96x16xf32>
    %20 = arith.mulf %9, %9 : vector<96x16xf32>
    %21 = arith.mulf %7, %9 : vector<96x16xf32>
    %22 = arith.subf %12, %19 : vector<96x16xf32>
    %23 = arith.subf %15, %20 : vector<96x16xf32>
    %24 = arith.subf %18, %21 : vector<96x16xf32>
    %cst_17 = arith.constant 2.000000e+00 : f32
    %25 = vector.broadcast %cst_17 : f32 to vector<96x16xf32>
    %26 = arith.mulf %25, %24 : vector<96x16xf32>
    %27 = vector.broadcast %1 : f32 to vector<96x16xf32>
    %28 = arith.addf %26, %27 : vector<96x16xf32>
    %29 = arith.addf %22, %23 : vector<96x16xf32>
    %30 = vector.broadcast %1 : f32 to vector<96x16xf32>
    %31 = arith.addf %29, %30 : vector<96x16xf32>
    %cst_18 = arith.constant 2.000000e+00 : f32
    %32 = vector.broadcast %cst_18 : f32 to vector<96x16xf32>
    %33 = arith.mulf %32, %21 : vector<96x16xf32>
    %34 = vector.broadcast %0 : f32 to vector<96x16xf32>
    %35 = arith.addf %33, %34 : vector<96x16xf32>
    %36 = arith.mulf %35, %28 : vector<96x16xf32>
    %37 = arith.addf %19, %20 : vector<96x16xf32>
    %38 = vector.broadcast %0 : f32 to vector<96x16xf32>
    %39 = arith.addf %37, %38 : vector<96x16xf32>
    %40 = arith.mulf %39, %31 : vector<96x16xf32>
    %41 = arith.divf %36, %40 : vector<96x16xf32>
    %42 = tpu.iota {dimensions = array<i32: 0>} : vector<96x16xi32>
    %c96_i32 = arith.constant 96 : i32
    %43 = arith.muli %arg0, %c96_i32 : i32
    %44 = vector.broadcast %43 : i32 to vector<96x16xi32>
    %45 = arith.addi %44, %42 : vector<96x16xi32>
    %c96_i32_19 = arith.constant 96 : i32
    %46 = vector.broadcast %c96_i32_19 : i32 to vector<96x16xi32>
    %47 = arith.cmpi slt, %45, %46 : vector<96x16xi32>
    %cst_20 = arith.constant 0.000000e+00 : f32
    %48 = vector.broadcast %cst_20 : f32 to vector<96x16xf32>
    %49 = arith.select %47, %41, %48 : vector<96x16xi1>, vector<96x16xf32>
    %50 = vector.shape_cast %49 : vector<96x16xf32> to vector<1x96x16xf32>
    %cst_21 = arith.constant dense<0.000000e+00> : vector<1xf32>
    %51 = vector.multi_reduction <add>, %50, %cst_21 [1, 2] : vector<1x96x16xf32> to vector<1xf32>
    %52 = vector.shape_cast %51 : vector<1xf32> to vector<1x1x1xf32>
    %53 = vector.extract %52[0, 0, 0] : f32 from vector<1x1x1xf32>
    %54 = vector.broadcast %53 : f32 to vector<8x128xf32>
    %c0_22 = arith.constant 0 : index
    %c0_23 = arith.constant 0 : index
    %55 = vector.load %arg6[%c0_22, %c0_23] : memref<8x128xf32, #tpu.memory_space<vmem>>, vector<8x128xf32>
    tpu.vector_store %arg6[%c0_22, %c0_23], %54 {strides = array<i32>} : memref<8x128xf32, #tpu.memory_space<vmem>>, vector<8x128xf32>,
    return
  }
  func.func @transform_0(%arg0: i32) -> i32 {
    %c0_i32 = arith.constant 0 : i32
    %c0_i32_0 = arith.constant 0 : i32
    return %c0_i32 : i32
  }
  func.func @transform_1(%arg0: i32) -> (i32, i32) {
    %c0_i32 = arith.constant 0 : i32
    %c0_i32_0 = arith.constant 0 : i32
    %c0_i32_1 = arith.constant 0 : i32
    return %c0_i32, %c0_i32_0 : i32, i32
  }
  func.func @transform_2(%arg0: i32) -> (i32, i32) {
    %c0_i32 = arith.constant 0 : i32
    %c0_i32_0 = arith.constant 0 : i32
    %c0_i32_1 = arith.constant 0 : i32
    return %c0_i32, %c0_i32_0 : i32, i32
  }
  func.func @transform_3(%arg0: i32) -> (i32, i32) {
    %c0_i32 = arith.constant 0 : i32
    %c0_i32_0 = arith.constant 0 : i32
    return %arg0, %c0_i32 : i32, i32
  }
  func.func @transform_4(%arg0: i32) -> (i32, i32) {
    %c0_i32 = arith.constant 0 : i32
    %c0_i32_0 = arith.constant 0 : i32
    return %arg0, %c0_i32 : i32, i32
  }
  func.func @transform_5(%arg0: i32) -> (i32, i32) {
    %c0_i32 = arith.constant 0 : i32
    %c0_i32_0 = arith.constant 0 : i32
    return %arg0, %c0_i32 : i32, i32
  }
}

</mosaic_0001>

<llo_original>
// kernel: tpu_custom_call.1
$region0: #{tpu_custom_call.1}
  #allocation0 [shape = 'u32[]', space=smem, size = 0x4, offset = 0x4, fixed_abs, tag = 'smem constant byte address 0x4 - core index']
  #allocation1 [shape = 'u32[144,128]{1,0:T(1,128)}', space=vmem, size = 0x12000, scoped, tag = 'internal scratch']
  %s0 = inlined_call_operand.vmem [shape: f32[2], index: 0, kind: input, shape index: {}]
  %s1 = inlined_call_operand.vmem [shape: f32[26,16], index: 1, kind: input, shape index: {}]
  %s2 = inlined_call_operand.vmem [shape: f32[96,192], index: 2, kind: input, shape index: {}]
  %s3 = inlined_call_operand.vmem [shape: f32[192,26], index: 3, kind: input, shape index: {}]
  %s4 = inlined_call_operand.vmem [shape: f32[192,26], index: 4, kind: input, shape index: {}]
  %s5 = inlined_call_operand.hbm [shape: f32[8,128], index: 5, kind: output, shape index: {}]
  %s6 = sld [smem:[#allocation0]]
  $region34: #{tpu_custom_call.1} parent=0
    _
  %s8 = ssub.s32 1, %s6
  %s9 = scalar_select 0, %s8, %s6
  $region1: #{tpu_custom_call.1} parent=0
    #allocation2 [shape = 'u8[512]{0}', space=smem, size = 0x200, scoped, tag = 'input window, operand 0, single buffered']
    #allocation3 [shape = 's32[1]{0}', space=sflag, size = 0x4, scoped, tag = 'scoped memory for tpu_custom_call.1']
    #allocation4 [shape = 's32[1]{0}', space=sflag, size = 0x4, scoped, tag = 'scoped memory for tpu_custom_call.1']
    #allocation5 [shape = 'u8[4096]{0}', space=vmem, size = 0x1000, scoped, tag = 'output window, operand 0, single buffered']
    %10 = vsyncpa [#allocation4], 0
    %11 = vsyncpa [#allocation3], 0
    // Predicated region
    $region2: #{tpu_custom_call.1} parent=1 // pred_check
      _
    $region3: #{tpu_custom_call.1} parent=1 // pred_check_branch
      %13 = sbr.rel (0) target = $region5
    $region4: #{tpu_custom_call.1} parent=1 // pred_region
      %s15 = ssub.s32 16, 16
      %16 = vsyncadd [#allocation4], %s15
      %s18 = sshll.u32 %s0, 4
      %s19 = int_to_ptr.vmem [resolvable:$true] %s18
      %21 = dma.vmem_to_smem %s19, 16, [#allocation2], [#allocation4]
    $region5: #{tpu_custom_call.1} parent=1 // pred_fallthru
      _
    // Predicated region
    $region6: #{tpu_custom_call.1} parent=1 // pred_check
      _
    $region7: #{tpu_custom_call.1} parent=1 // pred_check_branch
      %23 = sbr.rel (0) target = $region9
    $region8: #{tpu_custom_call.1} parent=1 // pred_region
      _
    $region9: #{tpu_custom_call.1} parent=1 // pred_fallthru
      _
    // Predicated region
    $region10: #{tpu_custom_call.1} parent=1 // pred_check
      _
    $region11: #{tpu_custom_call.1} parent=1 // pred_check_branch
      %25 = sbr.rel (0) target = $region13
    $region12: #{tpu_custom_call.1} parent=1 // pred_region
      _
    $region13: #{tpu_custom_call.1} parent=1 // pred_fallthru
      _
    // Predicated region
    $region14: #{tpu_custom_call.1} parent=1 // pred_check
      _
    $region15: #{tpu_custom_call.1} parent=1 // pred_check_branch
      %27 = sbr.rel (0) target = $region17
    $region16: #{tpu_custom_call.1} parent=1 // pred_region
      _
    $region17: #{tpu_custom_call.1} parent=1 // pred_fallthru
      _
    // Predicated region
    $region18: #{tpu_custom_call.1} parent=1 // pred_check
      _
    $region19: #{tpu_custom_call.1} parent=1 // pred_check_branch
      %29 = sbr.rel (0) target = $region21
    $region20: #{tpu_custom_call.1} parent=1 // pred_region
      _
    $region21: #{tpu_custom_call.1} parent=1 // pred_fallthru
      _
    // Predicated region
    $region22: #{tpu_custom_call.1} parent=1 // pred_check
      _
    $region23: #{tpu_custom_call.1} parent=1 // pred_check_branch
      %31 = sbr.rel (0) target = $region25
    $region24: #{tpu_custom_call.1} parent=1 // pred_region
      %32 = dma.done [#allocation4], 16
    $region25: #{tpu_custom_call.1} parent=1 // pred_fallthru
      _
    %33 = sfence
    %s34 = sld [smem:[#allocation2]]
    %s35 = sld [smem:[#allocation2 + $0x1]]
    %v36 = vld [vmem:[%s1] sm:$0xff]
    %v37 = vld [vmem:[%s1 + $0x8] sm:$0xff]
    %v38 = vld [vmem:[%s1 + $0x10] sm:$0xff]
    %v39 = vld [vmem:[%s1 + $0x18] sm:$0x3]
    %v40 = vld [vmem:[%s2] sm:$0xff]
    %v41 = vld [vmem:[%s2 + $0x8] sm:$0xff]
    %v42 = vld [vmem:[%s2 + $0x10] sm:$0xff]
    %v43 = vld [vmem:[%s2 + $0x18] sm:$0xff]
    %v44 = vld [vmem:[%s2 + $0x20] sm:$0xff]
    %v45 = vld [vmem:[%s2 + $0x28] sm:$0xff]
    %v46 = vld [vmem:[%s2 + $0x30] sm:$0xff]
    %v47 = vld [vmem:[%s2 + $0x38] sm:$0xff]
    %v48 = vld [vmem:[%s2 + $0x40] sm:$0xff]
    %v49 = vld [vmem:[%s2 + $0x48] sm:$0xff]
    %v50 = vld [vmem:[%s2 + $0x50] sm:$0xff]
    %v51 = vld [vmem:[%s2 + $0x58] sm:$0xff]
    %v52 = vld [vmem:[%s2 + $0x60] sm:$0xff]
    %v53 = vld [vmem:[%s2 + $0x68] sm:$0xff]
    %v54 = vld [vmem:[%s2 + $0x70] sm:$0xff]
    %v55 = vld [vmem:[%s2 + $0x78] sm:$0xff]
    %v56 = vld [vmem:[%s2 + $0x80] sm:$0xff]
    %v57 = vld [vmem:[%s2 + $0x88] sm:$0xff]
    %v58 = vld [vmem:[%s2 + $0x90] sm:$0xff]
    %v59 = vld [vmem:[%s2 + $0x98] sm:$0xff]
    %v60 = vld [vmem:[%s2 + $0xa0] sm:$0xff]
    %v61 = vld [vmem:[%s2 + $0xa8] sm:$0xff]
    %v62 = vld [vmem:[%s2 + $0xb0] sm:$0xff]
    %v63 = vld [vmem:[%s2 + $0xb8] sm:$0xff]
    %v64 = vld [vmem:[%s3] sm:$0xff]
    %v65 = vld [vmem:[%s3 + $0x8] sm:$0xff]
    %v66 = vld [vmem:[%s3 + $0x10] sm:$0xff]
    %v67 = vld [vmem:[%s3 + $0x18] sm:$0xff]
    %v68 = vld [vmem:[%s3 + $0x20] sm:$0xff]
    %v69 = vld [vmem:[%s3 + $0x28] sm:$0xff]
    %v70 = vld [vmem:[%s3 + $0x30] sm:$0xff]
    %v71 = vld [vmem:[%s3 + $0x38] sm:$0xff]
    %v72 = vld [vmem:[%s3 + $0x40] sm:$0xff]
    %v73 = vld [vmem:[%s3 + $0x48] sm:$0xff]
    %v74 = vld [vmem:[%s3 + $0x50] sm:$0xff]
    %v75 = vld [vmem:[%s3 + $0x58] sm:$0xff]
    %v76 = vld [vmem:[%s3 + $0x60] sm:$0xff]
    %v77 = vld [vmem:[%s3 + $0x68] sm:$0xff]
    %v78 = vld [vmem:[%s3 + $0x70] sm:$0xff]
    %v79 = vld [vmem:[%s3 + $0x78] sm:$0xff]
    %v80 = vld [vmem:[%s3 + $0x80] sm:$0xff]
    %v81 = vld [vmem:[%s3 + $0x88] sm:$0xff]
    %v82 = vld [vmem:[%s3 + $0x90] sm:$0xff]
    %v83 = vld [vmem:[%s3 + $0x98] sm:$0xff]
    %v84 = vld [vmem:[%s3 + $0xa0] sm:$0xff]
    %v85 = vld [vmem:[%s3 + $0xa8] sm:$0xff]
    %v86 = vld [vmem:[%s3 + $0xb0] sm:$0xff]
    %v87 = vld [vmem:[%s3 + $0xb8] sm:$0xff]
    %v88 = vld [vmem:[%s4] sm:$0xff]
    %v89 = vld [vmem:[%s4 + $0x8] sm:$0xff]
    %v90 = vld [vmem:[%s4 + $0x10] sm:$0xff]
    %v91 = vld [vmem:[%s4 + $0x18] sm:$0xff]
    %v92 = vld [vmem:[%s4 + $0x20] sm:$0xff]
    %v93 = vld [vmem:[%s4 + $0x28] sm:$0xff]
    %v94 = vld [vmem:[%s4 + $0x30] sm:$0xff]
    %v95 = vld [vmem:[%s4 + $0x38] sm:$0xff]
    %v96 = vld [vmem:[%s4 + $0x40] sm:$0xff]
    %v97 = vld [vmem:[%s4 + $0x48] sm:$0xff]
    %v98 = vld [vmem:[%s4 + $0x50] sm:$0xff]
    %v99 = vld [vmem:[%s4 + $0x58] sm:$0xff]
    %v100 = vld [vmem:[%s4 + $0x60] sm:$0xff]
    %v101 = vld [vmem:[%s4 + $0x68] sm:$0xff]
    %v102 = vld [vmem:[%s4 + $0x70] sm:$0xff]
    %v103 = vld [vmem:[%s4 + $0x78] sm:$0xff]
    %v104 = vld [vmem:[%s4 + $0x80] sm:$0xff]
    %v105 = vld [vmem:[%s4 + $0x88] sm:$0xff]
    %v106 = vld [vmem:[%s4 + $0x90] sm:$0xff]
    %v107 = vld [vmem:[%s4 + $0x98] sm:$0xff]
    %v108 = vld [vmem:[%s4 + $0xa0] sm:$0xff]
    %v109 = vld [vmem:[%s4 + $0xa8] sm:$0xff]
    %v110 = vld [vmem:[%s4 + $0xb0] sm:$0xff]
    %v111 = vld [vmem:[%s4 + $0xb8] sm:$0xff]
    %vm112 = vcmask 211968
    %v114 = vsel %vm112, %v64, 0
    %v117 = vsel %vm112, %v65, 0
    %v120 = vsel %vm112, %v66, 0
    %v123 = vsel %vm112, %v67, 0
    %v126 = vsel %vm112, %v68, 0
    %v129 = vsel %vm112, %v69, 0
    %v132 = vsel %vm112, %v70, 0
    %v135 = vsel %vm112, %v71, 0
    %v138 = vsel %vm112, %v72, 0
    %v141 = vsel %vm112, %v73, 0
    %v144 = vsel %vm112, %v74, 0
    %v147 = vsel %vm112, %v75, 0
    %v150 = vsel %vm112, %v76, 0
    %v153 = vsel %vm112, %v77, 0
    %v156 = vsel %vm112, %v78, 0
    %v159 = vsel %vm112, %v79, 0
    %v162 = vsel %vm112, %v80, 0
    %v165 = vsel %vm112, %v81, 0
    %v168 = vsel %vm112, %v82, 0
    %v171 = vsel %vm112, %v83, 0
    %v174 = vsel %vm112, %v84, 0
    %v177 = vsel %vm112, %v85, 0
    %v180 = vsel %vm112, %v86, 0
    %v183 = vsel %vm112, %v87, 0
    %vm185 = vcmask 1041408
    %v187 = vsel %vm185, %v39, 0
    %189 = vmatprep.subr.mxu0 0.0
    %190 = vmatpush1.msra.mxu0 %v36
    %191 = vmatprep.subr.mxu0 0.0
    %192 = vmatpush1.msra.mxu0 %v37
    %193 = vmatprep.subr.mxu0 0.0
    %194 = vmatpush1.msra.mxu0 %v38
    %195 = vmatprep.subr.mxu0 0.0
    %196 = vmatpush1.msra.mxu0 %v187
    %197 = vmatprep.subr.mxu0 0.0
    %198 = vmatpush1.msra.mxu0 0.0
    %199 = vmatprep.subr.mxu0 0.0
    %200 = vmatpush1.msra.mxu0 0.0
    %201 = vmatprep.subr.mxu0 0.0
    %202 = vmatpush1.msra.mxu0 0.0
    %203 = vmatprep.subr.mxu0 0.0
    %204 = vmatpush1.msra.mxu0 0.0
    %205 = vmatprep.subr.mxu0 0.0
    %206 = vmatpush1.msra.mxu0 0.0
    %207 = vmatprep.subr.mxu0 0.0
    %208 = vmatpush1.msra.mxu0 0.0
    %209 = vmatprep.subr.mxu0 0.0
    %210 = vmatpush1.msra.mxu0 0.0
    %211 = vmatprep.subr.mxu0 0.0
    %212 = vmatpush1.msra.mxu0 0.0
    %213 = vmatprep.subr.mxu0 0.0
    %214 = vmatpush1.msra.mxu0 0.0
    %215 = vmatprep.subr.mxu0 0.0
    %216 = vmatpush1.msra.mxu0 0.0
    %217 = vmatprep.subr.mxu0 0.0
    %218 = vmatpush1.msra.mxu0 0.0
    %219 = vmatprep.subr.mxu0 0.0
    %220 = vmatpush1.msra.mxu0 0.0
    %221 = vmatprep.subr.mxu0 0.0
    %222 = vmatpush1.msra.mxu0 0.0
    %223 = vmatprep.subr.mxu0 0.0
    %224 = vmatpush1.msra.mxu0 0.0
    %225 = vmatprep.subr.mxu0 0.0
    %226 = vmatpush1.msra.mxu0 0.0
    %227 = vmatprep.subr.mxu0 0.0
    %228 = vmatpush1.msra.mxu0 0.0
    %229 = vmatprep.subr.mxu0 0.0
    %230 = vmatpush1.msra.mxu0 0.0
    %231 = vmatprep.subr.mxu0 0.0
    %232 = vmatpush1.msra.mxu0 0.0
    %233 = vmatprep.subr.mxu0 0.0
    %234 = vmatpush1.msra.mxu0 0.0
    %235 = vmatprep.subr.mxu0 0.0
    %236 = vmatpush1.msra.mxu0 0.0
    %237 = vmatprep.subr.mxu0 0.0
    %238 = vmatpush1.msra.mxu0 0.0
    %239 = vmatprep.subr.mxu0 0.0
    %240 = vmatpush1.msra.mxu0 0.0
    %241 = vmatprep.subr.mxu0 0.0
    %242 = vmatpush1.msra.mxu0 0.0
    %243 = vmatprep.subr.mxu0 0.0
    %244 = vmatpush1.msra.mxu0 0.0
    %245 = vmatprep.subr.mxu0 0.0
    %246 = vmatpush1.msra.mxu0 0.0
    %247 = vmatprep.subr.mxu0 0.0
    %248 = vmatpush1.msra.mxu0 0.0
    %249 = vmatprep.subr.mxu0 0.0
    %250 = vmatpush1.msra.mxu0 0.0
    %251 = vmatprep.subr.mxu0 0.0
    %252 = vmatpush1.msra.mxu0 0.0
    %253 = vmatprep.mubr.f32.mxu0 0.0
    %254 = vmatmul.mubr.f32.gmra.mrb[0].mxu0 %v114
    %v255 = vpop.f32.mrb[0].mxu0
    %v256 = vadd.f32 0.0, %v255
    %v257 = vpop.f32.mrb[0].mxu0
    %258 = vmatprep.mubr.f32.mxu0 0.0
    %259 = vmatmul.mubr.f32.gmra.mrb[0].mxu0 %v117
    %v260 = vpop.f32.mrb[0].mxu0
    %v261 = vadd.f32 0.0, %v260
    %v262 = vpop.f32.mrb[0].mxu0
    %263 = vmatprep.mubr.f32.mxu0 0.0
    %264 = vmatmul.mubr.f32.gmra.mrb[0].mxu0 %v120
    %v265 = vpop.f32.mrb[0].mxu0
    %v266 = vadd.f32 0.0, %v265
    %v267 = vpop.f32.mrb[0].mxu0
    %268 = vmatprep.mubr.f32.mxu0 0.0
    %269 = vmatmul.mubr.f32.gmra.mrb[0].mxu0 %v123
    %v270 = vpop.f32.mrb[0].mxu0
    %v271 = vadd.f32 0.0, %v270
    %v272 = vpop.f32.mrb[0].mxu0
    %273 = vmatprep.mubr.f32.mxu0 0.0
    %274 = vmatmul.mubr.f32.gmra.mrb[0].mxu0 %v126
    %v275 = vpop.f32.mrb[0].mxu0
    %v276 = vadd.f32 0.0, %v275
    %v277 = vpop.f32.mrb[0].mxu0
    %278 = vmatprep.mubr.f32.mxu0 0.0
    %279 = vmatmul.mubr.f32.gmra.mrb[0].mxu0 %v129
    %v280 = vpop.f32.mrb[0].mxu0
    %v281 = vadd.f32 0.0, %v280
    %v282 = vpop.f32.mrb[0].mxu0
    %283 = vmatprep.mubr.f32.mxu0 0.0
    %284 = vmatmul.mubr.f32.gmra.mrb[0].mxu0 %v132
    %v285 = vpop.f32.mrb[0].mxu0
    %v286 = vadd.f32 0.0, %v285
    %v287 = vpop.f32.mrb[0].mxu0
    %288 = vmatprep.mubr.f32.mxu0 0.0
    %289 = vmatmul.mubr.f32.gmra.mrb[0].mxu0 %v135
    %v290 = vpop.f32.mrb[0].mxu0
    %v291 = vadd.f32 0.0, %v290
    %v292 = vpop.f32.mrb[0].mxu0
    %293 = vmatprep.mubr.f32.mxu0 0.0
    %294 = vmatmul.mubr.f32.gmra.mrb[0].mxu0 %v138
    %v295 = vpop.f32.mrb[0].mxu0
    %v296 = vadd.f32 0.0, %v295
    %v297 = vpop.f32.mrb[0].mxu0
    %298 = vmatprep.mubr.f32.mxu0 0.0
    %299 = vmatmul.mubr.f32.gmra.mrb[0].mxu0 %v141
    %v300 = vpop.f32.mrb[0].mxu0
    %v301 = vadd.f32 0.0, %v300
    %v302 = vpop.f32.mrb[0].mxu0
    %303 = vmatprep.mubr.f32.mxu0 0.0
    %304 = vmatmul.mubr.f32.gmra.mrb[0].mxu0 %v144
    %v305 = vpop.f32.mrb[0].mxu0
    %v306 = vadd.f32 0.0, %v305
    %v307 = vpop.f32.mrb[0].mxu0
    %308 = vmatprep.mubr.f32.mxu0 0.0
    %309 = vmatmul.mubr.f32.gmra.mrb[0].mxu0 %v147
    %v310 = vpop.f32.mrb[0].mxu0
    %v311 = vadd.f32 0.0, %v310
    %v312 = vpop.f32.mrb[0].mxu0
    %313 = vmatprep.mubr.f32.mxu0 0.0
    %314 = vmatmul.mubr.f32.gmra.mrb[0].mxu0 %v150
    %v315 = vpop.f32.mrb[0].mxu0
    %v316 = vadd.f32 0.0, %v315
    %v317 = vpop.f32.mrb[0].mxu0
    %318 = vmatprep.mubr.f32.mxu0 0.0
    %319 = vmatmul.mubr.f32.gmra.mrb[0].mxu0 %v153
    %v320 = vpop.f32.mrb[0].mxu0
    %v321 = vadd.f32 0.0, %v320
    %v322 = vpop.f32.mrb[0].mxu0
    %323 = vmatprep.mubr.f32.mxu0 0.0
    %324 = vmatmul.mubr.f32.gmra.mrb[0].mxu0 %v156
    %v325 = vpop.f32.mrb[0].mxu0
    %v326 = vadd.f32 0.0, %v325
    %v327 = vpop.f32.mrb[0].mxu0
    %328 = vmatprep.mubr.f32.mxu0 0.0
    %329 = vmatmul.mubr.f32.gmra.mrb[0].mxu0 %v159
    %v330 = vpop.f32.mrb[0].mxu0
    %v331 = vadd.f32 0.0, %v330
    %v332 = vpop.f32.mrb[0].mxu0
    %333 = vmatprep.mubr.f32.mxu0 0.0
    %334 = vmatmul.mubr.f32.gmra.mrb[0].mxu0 %v162
    %v335 = vpop.f32.mrb[0].mxu0
    %v336 = vadd.f32 0.0, %v335
    %v337 = vpop.f32.mrb[0].mxu0
    %338 = vmatprep.mubr.f32.mxu0 0.0
    %339 = vmatmul.mubr.f32.gmra.mrb[0].mxu0 %v165
    %v340 = vpop.f32.mrb[0].mxu0
    %v341 = vadd.f32 0.0, %v340
    %v342 = vpop.f32.mrb[0].mxu0
    %343 = vmatprep.mubr.f32.mxu0 0.0
    %344 = vmatmul.mubr.f32.gmra.mrb[0].mxu0 %v168
    %v345 = vpop.f32.mrb[0].mxu0
    %v346 = vadd.f32 0.0, %v345
    %v347 = vpop.f32.mrb[0].mxu0
    %348 = vmatprep.mubr.f32.mxu0 0.0
    %349 = vmatmul.mubr.f32.gmra.mrb[0].mxu0 %v171
    %v350 = vpop.f32.mrb[0].mxu0
    %v351 = vadd.f32 0.0, %v350
    %v352 = vpop.f32.mrb[0].mxu0
    %353 = vmatprep.mubr.f32.mxu0 0.0
    %354 = vmatmul.mubr.f32.gmra.mrb[0].mxu0 %v174
    %v355 = vpop.f32.mrb[0].mxu0
    %v356 = vadd.f32 0.0, %v355
    %v357 = vpop.f32.mrb[0].mxu0
    %358 = vmatprep.mubr.f32.mxu0 0.0
    %359 = vmatmul.mubr.f32.gmra.mrb[0].mxu0 %v177
    %v360 = vpop.f32.mrb[0].mxu0
    %v361 = vadd.f32 0.0, %v360
    %v362 = vpop.f32.mrb[0].mxu0
    %363 = vmatprep.mubr.f32.mxu0 0.0
    %364 = vmatmul.mubr.f32.gmra.mrb[0].mxu0 %v180
    %v365 = vpop.f32.mrb[0].mxu0
    %v366 = vadd.f32 0.0, %v365
    %v367 = vpop.f32.mrb[0].mxu0
    %368 = vmatprep.mubr.f32.mxu0 0.0
    %369 = vmatmul.mubr.f32.gmra.mrb[0].mxu0 %v183
    %v370 = vpop.f32.mrb[0].mxu0
    %v371 = vadd.f32 0.0, %v370
    %v372 = vpop.f32.mrb[0].mxu0
    %373 = vdwg.mxu0
    %vm374 = vcmask 523264
    %v376 = vsel %vm374, %v41, 0
    %v379 = vsel %vm374, %v43, 0
    %v382 = vsel %vm374, %v45, 0
    %v385 = vsel %vm374, %v47, 0
    %v388 = vsel %vm374, %v49, 0
    %v391 = vsel %vm374, %v51, 0
    %v394 = vsel %vm374, %v53, 0
    %v397 = vsel %vm374, %v55, 0
    %v400 = vsel %vm374, %v57, 0
    %v403 = vsel %vm374, %v59, 0
    %v406 = vsel %vm374, %v61, 0
    %v409 = vsel %vm374, %v63, 0
    %411 = vmatprep.subr.mxu0 0.0
    %412 = vmatpush1.msra.mxu0 %v256
    %413 = vmatprep.subr.mxu0 0.0
    %414 = vmatpush1.msra.mxu0 %v261
    %415 = vmatprep.subr.mxu0 0.0
    %416 = vmatpush1.msra.mxu0 %v266
    %417 = vmatprep.subr.mxu0 0.0
    %418 = vmatpush1.msra.mxu0 %v271
    %419 = vmatprep.subr.mxu0 0.0
    %420 = vmatpush1.msra.mxu0 %v276
    %421 = vmatprep.subr.mxu0 0.0
    %422 = vmatpush1.msra.mxu0 %v281
    %423 = vmatprep.subr.mxu0 0.0
    %424 = vmatpush1.msra.mxu0 %v286
    %425 = vmatprep.subr.mxu0 0.0
    %426 = vmatpush1.msra.mxu0 %v291
    %427 = vmatprep.subr.mxu0 0.0
    %428 = vmatpush1.msra.mxu0 %v296
    %429 = vmatprep.subr.mxu0 0.0
    %430 = vmatpush1.msra.mxu0 %v301
    %431 = vmatprep.subr.mxu0 0.0
    %432 = vmatpush1.msra.mxu0 %v306
    %433 = vmatprep.subr.mxu0 0.0
    %434 = vmatpush1.msra.mxu0 %v311
    %435 = vmatprep.subr.mxu0 0.0
    %436 = vmatpush1.msra.mxu0 %v316
    %437 = vmatprep.subr.mxu0 0.0
    %438 = vmatpush1.msra.mxu0 %v321
    %439 = vmatprep.subr.mxu0 0.0
    %440 = vmatpush1.msra.mxu0 %v326
    %441 = vmatprep.subr.mxu0 0.0
    %442 = vmatpush1.msra.mxu0 %v331
    %443 = vmatprep.subr.mxu0 0.0
    %444 = vmatpush1.msra.mxu0 %v336
    %445 = vmatprep.subr.mxu0 0.0
    %446 = vmatpush1.msra.mxu0 %v341
    %447 = vmatprep.subr.mxu0 0.0
    %448 = vmatpush1.msra.mxu0 %v346
    %449 = vmatprep.subr.mxu0 0.0
    %450 = vmatpush1.msra.mxu0 %v351
    %451 = vmatprep.subr.mxu0 0.0
    %452 = vmatpush1.msra.mxu0 %v356
    %453 = vmatprep.subr.mxu0 0.0
    %454 = vmatpush1.msra.mxu0 %v361
    %455 = vmatprep.subr.mxu0 0.0
    %456 = vmatpush1.msra.mxu0 %v366
    %457 = vmatprep.subr.mxu0 0.0
    %458 = vmatpush1.msra.mxu0 %v371
    %459 = vmatprep.subr.mxu0 0.0
    %460 = vmatpush1.msra.mxu0 0.0
    %461 = vmatprep.subr.mxu0 0.0
    %462 = vmatpush1.msra.mxu0 0.0
    %463 = vmatprep.subr.mxu0 0.0
    %464 = vmatpush1.msra.mxu0 0.0
    %465 = vmatprep.subr.mxu0 0.0
    %466 = vmatpush1.msra.mxu0 0.0
    %467 = vmatprep.subr.mxu0 0.0
    %468 = vmatpush1.msra.mxu0 0.0
    %469 = vmatprep.subr.mxu0 0.0
    %470 = vmatpush1.msra.mxu0 0.0
    %471 = vmatprep.subr.mxu0 0.0
    %472 = vmatpush1.msra.mxu0 0.0
    %473 = vmatprep.subr.mxu0 0.0
    %474 = vmatpush1.msra.mxu0 0.0
    %475 = vmatprep.mubr.f32.mxu0 %v376
    %476 = vmatmul.mubr.f32.gmra.mrb[0].mxu0 %v40
    %v477 = vpop.f32.mrb[0].mxu0
    %v478 = vadd.f32 0.0, %v477
    %v479 = vpop.f32.mrb[0].mxu0
    %480 = vmatprep.mubr.f32.mxu0 %v379
    %481 = vmatmul.mubr.f32.gmra.mrb[0].mxu0 %v42
    %v482 = vpop.f32.mrb[0].mxu0
    %v483 = vadd.f32 0.0, %v482
    %v484 = vpop.f32.mrb[0].mxu0
    %485 = vmatprep.mubr.f32.mxu0 %v382
    %486 = vmatmul.mubr.f32.gmra.mrb[0].mxu0 %v44
    %v487 = vpop.f32.mrb[0].mxu0
    %v488 = vadd.f32 0.0, %v487
    %v489 = vpop.f32.mrb[0].mxu0
    %490 = vmatprep.mubr.f32.mxu0 %v385
    %491 = vmatmul.mubr.f32.gmra.mrb[0].mxu0 %v46
    %v492 = vpop.f32.mrb[0].mxu0
    %v493 = vadd.f32 0.0, %v492
    %v494 = vpop.f32.mrb[0].mxu0
    %495 = vmatprep.mubr.f32.mxu0 %v388
    %496 = vmatmul.mubr.f32.gmra.mrb[0].mxu0 %v48
    %v497 = vpop.f32.mrb[0].mxu0
    %v498 = vadd.f32 0.0, %v497
    %v499 = vpop.f32.mrb[0].mxu0
    %500 = vmatprep.mubr.f32.mxu0 %v391
    %501 = vmatmul.mubr.f32.gmra.mrb[0].mxu0 %v50
    %v502 = vpop.f32.mrb[0].mxu0
    %v503 = vadd.f32 0.0, %v502
    %v504 = vpop.f32.mrb[0].mxu0
    %505 = vmatprep.mubr.f32.mxu0 %v394
    %506 = vmatmul.mubr.f32.gmra.mrb[0].mxu0 %v52
    %v507 = vpop.f32.mrb[0].mxu0
    %v508 = vadd.f32 0.0, %v507
    %v509 = vpop.f32.mrb[0].mxu0
    %510 = vmatprep.mubr.f32.mxu0 %v397
    %511 = vmatmul.mubr.f32.gmra.mrb[0].mxu0 %v54
    %v512 = vpop.f32.mrb[0].mxu0
    %v513 = vadd.f32 0.0, %v512
    %v514 = vpop.f32.mrb[0].mxu0
    %515 = vmatprep.mubr.f32.mxu0 %v400
    %516 = vmatmul.mubr.f32.gmra.mrb[0].mxu0 %v56
    %v517 = vpop.f32.mrb[0].mxu0
    %v518 = vadd.f32 0.0, %v517
    %v519 = vpop.f32.mrb[0].mxu0
    %520 = vmatprep.mubr.f32.mxu0 %v403
    %521 = vmatmul.mubr.f32.gmra.mrb[0].mxu0 %v58
    %v522 = vpop.f32.mrb[0].mxu0
    %v523 = vadd.f32 0.0, %v522
    %v524 = vpop.f32.mrb[0].mxu0
    %525 = vmatprep.mubr.f32.mxu0 %v406
    %526 = vmatmul.mubr.f32.gmra.mrb[0].mxu0 %v60
    %v527 = vpop.f32.mrb[0].mxu0
    %v528 = vadd.f32 0.0, %v527
    %v529 = vpop.f32.mrb[0].mxu0
    %530 = vmatprep.mubr.f32.mxu0 %v409
    %531 = vmatmul.mubr.f32.gmra.mrb[0].mxu0 %v62
    %v532 = vpop.f32.mrb[0].mxu0
    %v533 = vadd.f32 0.0, %v532
    %v534 = vpop.f32.mrb[0].mxu0
    %535 = vdwg.mxu0
    %v537 = vsel %vm112, %v88, 0
    %v540 = vsel %vm112, %v89, 0
    %v543 = vsel %vm112, %v90, 0
    %v546 = vsel %vm112, %v91, 0
    %v549 = vsel %vm112, %v92, 0
    %v552 = vsel %vm112, %v93, 0
    %v555 = vsel %vm112, %v94, 0
    %v558 = vsel %vm112, %v95, 0
    %v561 = vsel %vm112, %v96, 0
    %v564 = vsel %vm112, %v97, 0
    %v567 = vsel %vm112, %v98, 0
    %v570 = vsel %vm112, %v99, 0
    %v573 = vsel %vm112, %v100, 0
    %v576 = vsel %vm112, %v101, 0
    %v579 = vsel %vm112, %v102, 0
    %v582 = vsel %vm112, %v103, 0
    %v585 = vsel %vm112, %v104, 0
    %v588 = vsel %vm112, %v105, 0
    %v591 = vsel %vm112, %v106, 0
    %v594 = vsel %vm112, %v107, 0
    %v597 = vsel %vm112, %v108, 0
    %v600 = vsel %vm112, %v109, 0
    %v603 = vsel %vm112, %v110, 0
    %v606 = vsel %vm112, %v111, 0
    %608 = vmatprep.subr.mxu0 0.0
    %609 = vmatpush1.msra.mxu0 %v36
    %610 = vmatprep.subr.mxu0 0.0
    %611 = vmatpush1.msra.mxu0 %v37
    %612 = vmatprep.subr.mxu0 0.0
    %613 = vmatpush1.msra.mxu0 %v38
    %614 = vmatprep.subr.mxu0 0.0
    %615 = vmatpush1.msra.mxu0 %v187
    %616 = vmatprep.subr.mxu0 0.0
    %617 = vmatpush1.msra.mxu0 0.0
    %618 = vmatprep.subr.mxu0 0.0
    %619 = vmatpush1.msra.mxu0 0.0
    %620 = vmatprep.subr.mxu0 0.0
    %621 = vmatpush1.msra.mxu0 0.0
    %622 = vmatprep.subr.mxu0 0.0
    %623 = vmatpush1.msra.mxu0 0.0
    %624 = vmatprep.subr.mxu0 0.0
    %625 = vmatpush1.msra.mxu0 0.0
    %626 = vmatprep.subr.mxu0 0.0
    %627 = vmatpush1.msra.mxu0 0.0
    %628 = vmatprep.subr.mxu0 0.0
    %629 = vmatpush1.msra.mxu0 0.0
    %630 = vmatprep.subr.mxu0 0.0
    %631 = vmatpush1.msra.mxu0 0.0
    %632 = vmatprep.subr.mxu0 0.0
    %633 = vmatpush1.msra.mxu0 0.0
    %634 = vmatprep.subr.mxu0 0.0
    %635 = vmatpush1.msra.mxu0 0.0
    %636 = vmatprep.subr.mxu0 0.0
    %637 = vmatpush1.msra.mxu0 0.0
    %638 = vmatprep.subr.mxu0 0.0
    %639 = vmatpush1.msra.mxu0 0.0
    %640 = vmatprep.subr.mxu0 0.0
    %641 = vmatpush1.msra.mxu0 0.0
    %642 = vmatprep.subr.mxu0 0.0
    %643 = vmatpush1.msra.mxu0 0.0
    %644 = vmatprep.subr.mxu0 0.0
    %645 = vmatpush1.msra.mxu0 0.0
    %646 = vmatprep.subr.mxu0 0.0
    %647 = vmatpush1.msra.mxu0 0.0
    %648 = vmatprep.subr.mxu0 0.0
    %649 = vmatpush1.msra.mxu0 0.0
    %650 = vmatprep.subr.mxu0 0.0
    %651 = vmatpush1.msra.mxu0 0.0
    %652 = vmatprep.subr.mxu0 0.0
    %653 = vmatpush1.msra.mxu0 0.0
    %654 = vmatprep.subr.mxu0 0.0
    %655 = vmatpush1.msra.mxu0 0.0
    %656 = vmatprep.subr.mxu0 0.0
    %657 = vmatpush1.msra.mxu0 0.0
    %658 = vmatprep.subr.mxu0 0.0
    %659 = vmatpush1.msra.mxu0 0.0
    %660 = vmatprep.subr.mxu0 0.0
    %661 = vmatpush1.msra.mxu0 0.0
    %662 = vmatprep.subr.mxu0 0.0
    %663 = vmatpush1.msra.mxu0 0.0
    %664 = vmatprep.subr.mxu0 0.0
    %665 = vmatpush1.msra.mxu0 0.0
    %666 = vmatprep.subr.mxu0 0.0
    %667 = vmatpush1.msra.mxu0 0.0
    %668 = vmatprep.subr.mxu0 0.0
    %669 = vmatpush1.msra.mxu0 0.0
    %670 = vmatprep.subr.mxu0 0.0
    %671 = vmatpush1.msra.mxu0 0.0
    %672 = vmatprep.mubr.f32.mxu0 0.0
    %673 = vmatmul.mubr.f32.gmra.mrb[0].mxu0 %v537
    %v674 = vpop.f32.mrb[0].mxu0
    %v675 = vadd.f32 0.0, %v674
    %v676 = vpop.f32.mrb[0].mxu0
    %677 = vmatprep.mubr.f32.mxu0 0.0
    %678 = vmatmul.mubr.f32.gmra.mrb[0].mxu0 %v540
    %v679 = vpop.f32.mrb[0].mxu0
    %v680 = vadd.f32 0.0, %v679
    %v681 = vpop.f32.mrb[0].mxu0
    %682 = vmatprep.mubr.f32.mxu0 0.0
    %683 = vmatmul.mubr.f32.gmra.mrb[0].mxu0 %v543
    %v684 = vpop.f32.mrb[0].mxu0
    %v685 = vadd.f32 0.0, %v684
    %v686 = vpop.f32.mrb[0].mxu0
    %687 = vmatprep.mubr.f32.mxu0 0.0
    %688 = vmatmul.mubr.f32.gmra.mrb[0].mxu0 %v546
    %v689 = vpop.f32.mrb[0].mxu0
    %v690 = vadd.f32 0.0, %v689
    %v691 = vpop.f32.mrb[0].mxu0
    %692 = vmatprep.mubr.f32.mxu0 0.0
    %693 = vmatmul.mubr.f32.gmra.mrb[0].mxu0 %v549
    %v694 = vpop.f32.mrb[0].mxu0
    %v695 = vadd.f32 0.0, %v694
    %v696 = vpop.f32.mrb[0].mxu0
    %697 = vmatprep.mubr.f32.mxu0 0.0
    %698 = vmatmul.mubr.f32.gmra.mrb[0].mxu0 %v552
    %v699 = vpop.f32.mrb[0].mxu0
    %v700 = vadd.f32 0.0, %v699
    %v701 = vpop.f32.mrb[0].mxu0
    %702 = vmatprep.mubr.f32.mxu0 0.0
    %703 = vmatmul.mubr.f32.gmra.mrb[0].mxu0 %v555
    %v704 = vpop.f32.mrb[0].mxu0
    %v705 = vadd.f32 0.0, %v704
    %v706 = vpop.f32.mrb[0].mxu0
    %707 = vmatprep.mubr.f32.mxu0 0.0
    %708 = vmatmul.mubr.f32.gmra.mrb[0].mxu0 %v558
    %v709 = vpop.f32.mrb[0].mxu0
    %v710 = vadd.f32 0.0, %v709
    %v711 = vpop.f32.mrb[0].mxu0
    %712 = vmatprep.mubr.f32.mxu0 0.0
    %713 = vmatmul.mubr.f32.gmra.mrb[0].mxu0 %v561
    %v714 = vpop.f32.mrb[0].mxu0
    %v715 = vadd.f32 0.0, %v714
    %v716 = vpop.f32.mrb[0].mxu0
    %717 = vmatprep.mubr.f32.mxu0 0.0
    %718 = vmatmul.mubr.f32.gmra.mrb[0].mxu0 %v564
    %v719 = vpop.f32.mrb[0].mxu0
    %v720 = vadd.f32 0.0, %v719
    %v721 = vpop.f32.mrb[0].mxu0
    %722 = vmatprep.mubr.f32.mxu0 0.0
    %723 = vmatmul.mubr.f32.gmra.mrb[0].mxu0 %v567
    %v724 = vpop.f32.mrb[0].mxu0
    %v725 = vadd.f32 0.0, %v724
    %v726 = vpop.f32.mrb[0].mxu0
    %727 = vmatprep.mubr.f32.mxu0 0.0
    %728 = vmatmul.mubr.f32.gmra.mrb[0].mxu0 %v570
    %v729 = vpop.f32.mrb[0].mxu0
    %v730 = vadd.f32 0.0, %v729
    %v731 = vpop.f32.mrb[0].mxu0
    %732 = vmatprep.mubr.f32.mxu0 0.0
    %733 = vmatmul.mubr.f32.gmra.mrb[0].mxu0 %v573
    %v734 = vpop.f32.mrb[0].mxu0
    %v735 = vadd.f32 0.0, %v734
    %v736 = vpop.f32.mrb[0].mxu0
    %737 = vmatprep.mubr.f32.mxu0 0.0
    %738 = vmatmul.mubr.f32.gmra.mrb[0].mxu0 %v576
    %v739 = vpop.f32.mrb[0].mxu0
    %v740 = vadd.f32 0.0, %v739
    %v741 = vpop.f32.mrb[0].mxu0
    %742 = vmatprep.mubr.f32.mxu0 0.0
    %743 = vmatmul.mubr.f32.gmra.mrb[0].mxu0 %v579
    %v744 = vpop.f32.mrb[0].mxu0
    %v745 = vadd.f32 0.0, %v744
    %v746 = vpop.f32.mrb[0].mxu0
    %747 = vmatprep.mubr.f32.mxu0 0.0
    %748 = vmatmul.mubr.f32.gmra.mrb[0].mxu0 %v582
    %v749 = vpop.f32.mrb[0].mxu0
    %v750 = vadd.f32 0.0, %v749
    %v751 = vpop.f32.mrb[0].mxu0
    %752 = vmatprep.mubr.f32.mxu0 0.0
    %753 = vmatmul.mubr.f32.gmra.mrb[0].mxu0 %v585
    %v754 = vpop.f32.mrb[0].mxu0
    %v755 = vadd.f32 0.0, %v754
    %v756 = vpop.f32.mrb[0].mxu0
    %757 = vmatprep.mubr.f32.mxu0 0.0
    %758 = vmatmul.mubr.f32.gmra.mrb[0].mxu0 %v588
    %v759 = vpop.f32.mrb[0].mxu0
    %v760 = vadd.f32 0.0, %v759
    %v761 = vpop.f32.mrb[0].mxu0
    %762 = vmatprep.mubr.f32.mxu0 0.0
    %763 = vmatmul.mubr.f32.gmra.mrb[0].mxu0 %v591
    %v764 = vpop.f32.mrb[0].mxu0
    %v765 = vadd.f32 0.0, %v764
    %v766 = vpop.f32.mrb[0].mxu0
    %767 = vmatprep.mubr.f32.mxu0 0.0
    %768 = vmatmul.mubr.f32.gmra.mrb[0].mxu0 %v594
    %v769 = vpop.f32.mrb[0].mxu0
    %v770 = vadd.f32 0.0, %v769
    %v771 = vpop.f32.mrb[0].mxu0
    %772 = vmatprep.mubr.f32.mxu0 0.0
    %773 = vmatmul.mubr.f32.gmra.mrb[0].mxu0 %v597
    %v774 = vpop.f32.mrb[0].mxu0
    %v775 = vadd.f32 0.0, %v774
    %v776 = vpop.f32.mrb[0].mxu0
    %777 = vmatprep.mubr.f32.mxu0 0.0
    %778 = vmatmul.mubr.f32.gmra.mrb[0].mxu0 %v600
    %v779 = vpop.f32.mrb[0].mxu0
    %v780 = vadd.f32 0.0, %v779
    %v781 = vpop.f32.mrb[0].mxu0
    %782 = vmatprep.mubr.f32.mxu0 0.0
    %783 = vmatmul.mubr.f32.gmra.mrb[0].mxu0 %v603
    %v784 = vpop.f32.mrb[0].mxu0
    %v785 = vadd.f32 0.0, %v784
    %v786 = vpop.f32.mrb[0].mxu0
    %787 = vmatprep.mubr.f32.mxu0 0.0
    %788 = vmatmul.mubr.f32.gmra.mrb[0].mxu0 %v606
    %v789 = vpop.f32.mrb[0].mxu0
    %v790 = vadd.f32 0.0, %v789
    %v791 = vpop.f32.mrb[0].mxu0
    %792 = vdwg.mxu0
    %793 = vmatprep.subr.mxu0 0.0
    %794 = vmatpush1.msra.mxu0 %v675
    %795 = vmatprep.subr.mxu0 0.0
    %796 = vmatpush1.msra.mxu0 %v680
    %797 = vmatprep.subr.mxu0 0.0
    %798 = vmatpush1.msra.mxu0 %v685
    %799 = vmatprep.subr.mxu0 0.0
    %800 = vmatpush1.msra.mxu0 %v690
    %801 = vmatprep.subr.mxu0 0.0
    %802 = vmatpush1.msra.mxu0 %v695
    %803 = vmatprep.subr.mxu0 0.0
    %804 = vmatpush1.msra.mxu0 %v700
    %805 = vmatprep.subr.mxu0 0.0
    %806 = vmatpush1.msra.mxu0 %v705
    %807 = vmatprep.subr.mxu0 0.0
    %808 = vmatpush1.msra.mxu0 %v710
    %809 = vmatprep.subr.mxu0 0.0
    %810 = vmatpush1.msra.mxu0 %v715
    %811 = vmatprep.subr.mxu0 0.0
    %812 = vmatpush1.msra.mxu0 %v720
    %813 = vmatprep.subr.mxu0 0.0
    %814 = vmatpush1.msra.mxu0 %v725
    %815 = vmatprep.subr.mxu0 0.0
    %816 = vmatpush1.msra.mxu0 %v730
    %817 = vmatprep.subr.mxu0 0.0
    %818 = vmatpush1.msra.mxu0 %v735
    %819 = vmatprep.subr.mxu0 0.0
    %820 = vmatpush1.msra.mxu0 %v740
    %821 = vmatprep.subr.mxu0 0.0
    %822 = vmatpush1.msra.mxu0 %v745
    %823 = vmatprep.subr.mxu0 0.0
    %824 = vmatpush1.msra.mxu0 %v750
    %825 = vmatprep.subr.mxu0 0.0
    %826 = vmatpush1.msra.mxu0 %v755
    %827 = vmatprep.subr.mxu0 0.0
    %828 = vmatpush1.msra.mxu0 %v760
    %829 = vmatprep.subr.mxu0 0.0
    %830 = vmatpush1.msra.mxu0 %v765
    %831 = vmatprep.subr.mxu0 0.0
    %832 = vmatpush1.msra.mxu0 %v770
    %833 = vmatprep.subr.mxu0 0.0
    %834 = vmatpush1.msra.mxu0 %v775
    %835 = vmatprep.subr.mxu0 0.0
    %836 = vmatpush1.msra.mxu0 %v780
    %837 = vmatprep.subr.mxu0 0.0
    %838 = vmatpush1.msra.mxu0 %v785
    %839 = vmatprep.subr.mxu0 0.0
    %840 = vmatpush1.msra.mxu0 %v790
    %841 = vmatprep.subr.mxu0 0.0
    %842 = vmatpush1.msra.mxu0 0.0
    %843 = vmatprep.subr.mxu0 0.0
    %844 = vmatpush1.msra.mxu0 0.0
    %845 = vmatprep.subr.mxu0 0.0
    %846 = vmatpush1.msra.mxu0 0.0
    %847 = vmatprep.subr.mxu0 0.0
    %848 = vmatpush1.msra.mxu0 0.0
    %849 = vmatprep.subr.mxu0 0.0
    %850 = vmatpush1.msra.mxu0 0.0
    %851 = vmatprep.subr.mxu0 0.0
    %852 = vmatpush1.msra.mxu0 0.0
    %853 = vmatprep.subr.mxu0 0.0
    %854 = vmatpush1.msra.mxu0 0.0
    %855 = vmatprep.subr.mxu0 0.0
    %856 = vmatpush1.msra.mxu0 0.0
    %857 = vmatprep.mubr.f32.mxu0 %v376
    %858 = vmatmul.mubr.f32.gmra.mrb[0].mxu0 %v40
    %v859 = vpop.f32.mrb[0].mxu0
    %v860 = vadd.f32 0.0, %v859
    %v861 = vpop.f32.mrb[0].mxu0
    %862 = vmatprep.mubr.f32.mxu0 %v379
    %863 = vmatmul.mubr.f32.gmra.mrb[0].mxu0 %v42
    %v864 = vpop.f32.mrb[0].mxu0
    %v865 = vadd.f32 0.0, %v864
    %v866 = vpop.f32.mrb[0].mxu0
    %867 = vmatprep.mubr.f32.mxu0 %v382
    %868 = vmatmul.mubr.f32.gmra.mrb[0].mxu0 %v44
    %v869 = vpop.f32.mrb[0].mxu0
    %v870 = vadd.f32 0.0, %v869
    %v871 = vpop.f32.mrb[0].mxu0
    %872 = vmatprep.mubr.f32.mxu0 %v385
    %873 = vmatmul.mubr.f32.gmra.mrb[0].mxu0 %v46
    %v874 = vpop.f32.mrb[0].mxu0
    %v875 = vadd.f32 0.0, %v874
    %v876 = vpop.f32.mrb[0].mxu0
    %877 = vmatprep.mubr.f32.mxu0 %v388
    %878 = vmatmul.mubr.f32.gmra.mrb[0].mxu0 %v48
    %v879 = vpop.f32.mrb[0].mxu0
    %v880 = vadd.f32 0.0, %v879
    %v881 = vpop.f32.mrb[0].mxu0
    %882 = vmatprep.mubr.f32.mxu0 %v391
    %883 = vmatmul.mubr.f32.gmra.mrb[0].mxu0 %v50
    %v884 = vpop.f32.mrb[0].mxu0
    %v885 = vadd.f32 0.0, %v884
    %v886 = vpop.f32.mrb[0].mxu0
    %887 = vmatprep.mubr.f32.mxu0 %v394
    %888 = vmatmul.mubr.f32.gmra.mrb[0].mxu0 %v52
    %v889 = vpop.f32.mrb[0].mxu0
    %v890 = vadd.f32 0.0, %v889
    %v891 = vpop.f32.mrb[0].mxu0
    %892 = vmatprep.mubr.f32.mxu0 %v397
    %893 = vmatmul.mubr.f32.gmra.mrb[0].mxu0 %v54
    %v894 = vpop.f32.mrb[0].mxu0
    %v895 = vadd.f32 0.0, %v894
    %v896 = vpop.f32.mrb[0].mxu0
    %897 = vmatprep.mubr.f32.mxu0 %v400
    %898 = vmatmul.mubr.f32.gmra.mrb[0].mxu0 %v56
    %v899 = vpop.f32.mrb[0].mxu0
    %v900 = vadd.f32 0.0, %v899
    %v901 = vpop.f32.mrb[0].mxu0
    %902 = vmatprep.mubr.f32.mxu0 %v403
    %903 = vmatmul.mubr.f32.gmra.mrb[0].mxu0 %v58
    %v904 = vpop.f32.mrb[0].mxu0
    %v905 = vadd.f32 0.0, %v904
    %v906 = vpop.f32.mrb[0].mxu0
    %907 = vmatprep.mubr.f32.mxu0 %v406
    %908 = vmatmul.mubr.f32.gmra.mrb[0].mxu0 %v60
    %v909 = vpop.f32.mrb[0].mxu0
    %v910 = vadd.f32 0.0, %v909
    %v911 = vpop.f32.mrb[0].mxu0
    %912 = vmatprep.mubr.f32.mxu0 %v409
    %913 = vmatmul.mubr.f32.gmra.mrb[0].mxu0 %v62
    %v914 = vpop.f32.mrb[0].mxu0
    %v915 = vadd.f32 0.0, %v914
    %v916 = vpop.f32.mrb[0].mxu0
    %917 = vdwg.mxu0
    %v918 = vmul.f32 %v64, %v64
    %v919 = vmul.f32 %v65, %v65
    %v920 = vmul.f32 %v66, %v66
    %v921 = vmul.f32 %v67, %v67
    %v922 = vmul.f32 %v68, %v68
    %v923 = vmul.f32 %v69, %v69
    %v924 = vmul.f32 %v70, %v70
    %v925 = vmul.f32 %v71, %v71
    %v926 = vmul.f32 %v72, %v72
    %v927 = vmul.f32 %v73, %v73
    %v928 = vmul.f32 %v74, %v74
    %v929 = vmul.f32 %v75, %v75
    %v930 = vmul.f32 %v76, %v76
    %v931 = vmul.f32 %v77, %v77
    %v932 = vmul.f32 %v78, %v78
    %v933 = vmul.f32 %v79, %v79
    %v934 = vmul.f32 %v80, %v80
    %v935 = vmul.f32 %v81, %v81
    %v936 = vmul.f32 %v82, %v82
    %v937 = vmul.f32 %v83, %v83
    %v938 = vmul.f32 %v84, %v84
    %v939 = vmul.f32 %v85, %v85
    %v940 = vmul.f32 %v86, %v86
    %v941 = vmul.f32 %v87, %v87
    %v943 = vsel %vm112, %v918, 0
    %v946 = vsel %vm112, %v919, 0
    %v949 = vsel %vm112, %v920, 0
    %v952 = vsel %vm112, %v921, 0
    %v955 = vsel %vm112, %v922, 0
    %v958 = vsel %vm112, %v923, 0
    %v961 = vsel %vm112, %v924, 0
    %v964 = vsel %vm112, %v925, 0
    %v967 = vsel %vm112, %v926, 0
    %v970 = vsel %vm112, %v927, 0
    %v973 = vsel %vm112, %v928, 0
    %v976 = vsel %vm112, %v929, 0
    %v979 = vsel %vm112, %v930, 0
    %v982 = vsel %vm112, %v931, 0
    %v985 = vsel %vm112, %v932, 0
    %v988 = vsel %vm112, %v933, 0
    %v991 = vsel %vm112, %v934, 0
    %v994 = vsel %vm112, %v935, 0
    %v997 = vsel %vm112, %v936, 0
    %v1000 = vsel %vm112, %v937, 0
    %v1003 = vsel %vm112, %v938, 0
    %v1006 = vsel %vm112, %v939, 0
    %v1009 = vsel %vm112, %v940, 0
    %v1012 = vsel %vm112, %v941, 0
    %1014 = vmatprep.subr.mxu0 0.0
    %1015 = vmatpush1.msra.mxu0 %v36
    %1016 = vmatprep.subr.mxu0 0.0
    %1017 = vmatpush1.msra.mxu0 %v37
    %1018 = vmatprep.subr.mxu0 0.0
    %1019 = vmatpush1.msra.mxu0 %v38
    %1020 = vmatprep.subr.mxu0 0.0
    %1021 = vmatpush1.msra.mxu0 %v187
    %1022 = vmatprep.subr.mxu0 0.0
    %1023 = vmatpush1.msra.mxu0 0.0
    %1024 = vmatprep.subr.mxu0 0.0
    %1025 = vmatpush1.msra.mxu0 0.0
    %1026 = vmatprep.subr.mxu0 0.0
    %1027 = vmatpush1.msra.mxu0 0.0
    %1028 = vmatprep.subr.mxu0 0.0
    %1029 = vmatpush1.msra.mxu0 0.0
    %1030 = vmatprep.subr.mxu0 0.0
    %1031 = vmatpush1.msra.mxu0 0.0
    %1032 = vmatprep.subr.mxu0 0.0
    %1033 = vmatpush1.msra.mxu0 0.0
    %1034 = vmatprep.subr.mxu0 0.0
    %1035 = vmatpush1.msra.mxu0 0.0
    %1036 = vmatprep.subr.mxu0 0.0
    %1037 = vmatpush1.msra.mxu0 0.0
    %1038 = vmatprep.subr.mxu0 0.0
    %1039 = vmatpush1.msra.mxu0 0.0
    %1040 = vmatprep.subr.mxu0 0.0
    %1041 = vmatpush1.msra.mxu0 0.0
    %1042 = vmatprep.subr.mxu0 0.0
    %1043 = vmatpush1.msra.mxu0 0.0
    %1044 = vmatprep.subr.mxu0 0.0
    %1045 = vmatpush1.msra.mxu0 0.0
    %1046 = vmatprep.subr.mxu0 0.0
    %1047 = vmatpush1.msra.mxu0 0.0
    %1048 = vmatprep.subr.mxu0 0.0
    %1049 = vmatpush1.msra.mxu0 0.0
    %1050 = vmatprep.subr.mxu0 0.0
    %1051 = vmatpush1.msra.mxu0 0.0
    %1052 = vmatprep.subr.mxu0 0.0
    %1053 = vmatpush1.msra.mxu0 0.0
    %1054 = vmatprep.subr.mxu0 0.0
    %1055 = vmatpush1.msra.mxu0 0.0
    %1056 = vmatprep.subr.mxu0 0.0
    %1057 = vmatpush1.msra.mxu0 0.0
    %1058 = vmatprep.subr.mxu0 0.0
    %1059 = vmatpush1.msra.mxu0 0.0
    %1060 = vmatprep.subr.mxu0 0.0
    %1061 = vmatpush1.msra.mxu0 0.0
    %1062 = vmatprep.subr.mxu0 0.0
    %1063 = vmatpush1.msra.mxu0 0.0
    %1064 = vmatprep.subr.mxu0 0.0
    %1065 = vmatpush1.msra.mxu0 0.0
    %1066 = vmatprep.subr.mxu0 0.0
    %1067 = vmatpush1.msra.mxu0 0.0
    %1068 = vmatprep.subr.mxu0 0.0
    %1069 = vmatpush1.msra.mxu0 0.0
    %1070 = vmatprep.subr.mxu0 0.0
    %1071 = vmatpush1.msra.mxu0 0.0
    %1072 = vmatprep.subr.mxu0 0.0
    %1073 = vmatpush1.msra.mxu0 0.0
    %1074 = vmatprep.subr.mxu0 0.0
    %1075 = vmatpush1.msra.mxu0 0.0
    %1076 = vmatprep.subr.mxu0 0.0
    %1077 = vmatpush1.msra.mxu0 0.0
    %1078 = vmatprep.mubr.f32.mxu0 0.0
    %1079 = vmatmul.mubr.f32.gmra.mrb[0].mxu0 %v943
    %v1080 = vpop.f32.mrb[0].mxu0
    %v1081 = vadd.f32 0.0, %v1080
    %v1082 = vpop.f32.mrb[0].mxu0
    %1083 = vmatprep.mubr.f32.mxu0 0.0
    %1084 = vmatmul.mubr.f32.gmra.mrb[0].mxu0 %v946
    %v1085 = vpop.f32.mrb[0].mxu0
    %v1086 = vadd.f32 0.0, %v1085
    %v1087 = vpop.f32.mrb[0].mxu0
    %1088 = vmatprep.mubr.f32.mxu0 0.0
    %1089 = vmatmul.mubr.f32.gmra.mrb[0].mxu0 %v949
    %v1090 = vpop.f32.mrb[0].mxu0
    %v1091 = vadd.f32 0.0, %v1090
    %v1092 = vpop.f32.mrb[0].mxu0
    %1093 = vmatprep.mubr.f32.mxu0 0.0
    %1094 = vmatmul.mubr.f32.gmra.mrb[0].mxu0 %v952
    %v1095 = vpop.f32.mrb[0].mxu0
    %v1096 = vadd.f32 0.0, %v1095
    %v1097 = vpop.f32.mrb[0].mxu0
    %1098 = vmatprep.mubr.f32.mxu0 0.0
    %1099 = vmatmul.mubr.f32.gmra.mrb[0].mxu0 %v955
    %v1100 = vpop.f32.mrb[0].mxu0
    %v1101 = vadd.f32 0.0, %v1100
    %v1102 = vpop.f32.mrb[0].mxu0
    %1103 = vmatprep.mubr.f32.mxu0 0.0
    %1104 = vmatmul.mubr.f32.gmra.mrb[0].mxu0 %v958
    %v1105 = vpop.f32.mrb[0].mxu0
    %v1106 = vadd.f32 0.0, %v1105
    %v1107 = vpop.f32.mrb[0].mxu0
    %1108 = vmatprep.mubr.f32.mxu0 0.0
    %1109 = vmatmul.mubr.f32.gmra.mrb[0].mxu0 %v961
    %v1110 = vpop.f32.mrb[0].mxu0
    %v1111 = vadd.f32 0.0, %v1110
    %v1112 = vpop.f32.mrb[0].mxu0
    %1113 = vmatprep.mubr.f32.mxu0 0.0
    %1114 = vmatmul.mubr.f32.gmra.mrb[0].mxu0 %v964
    %v1115 = vpop.f32.mrb[0].mxu0
    %v1116 = vadd.f32 0.0, %v1115
    %v1117 = vpop.f32.mrb[0].mxu0
    %1118 = vmatprep.mubr.f32.mxu0 0.0
    %1119 = vmatmul.mubr.f32.gmra.mrb[0].mxu0 %v967
    %v1120 = vpop.f32.mrb[0].mxu0
    %v1121 = vadd.f32 0.0, %v1120
    %v1122 = vpop.f32.mrb[0].mxu0
    %1123 = vmatprep.mubr.f32.mxu0 0.0
    %1124 = vmatmul.mubr.f32.gmra.mrb[0].mxu0 %v970
    %v1125 = vpop.f32.mrb[0].mxu0
    %v1126 = vadd.f32 0.0, %v1125
    %v1127 = vpop.f32.mrb[0].mxu0
    %1128 = vmatprep.mubr.f32.mxu0 0.0
    %1129 = vmatmul.mubr.f32.gmra.mrb[0].mxu0 %v973
    %v1130 = vpop.f32.mrb[0].mxu0
    %v1131 = vadd.f32 0.0, %v1130
    %v1132 = vpop.f32.mrb[0].mxu0
    %1133 = vmatprep.mubr.f32.mxu0 0.0
    %1134 = vmatmul.mubr.f32.gmra.mrb[0].mxu0 %v976
    %v1135 = vpop.f32.mrb[0].mxu0
    %v1136 = vadd.f32 0.0, %v1135
    %v1137 = vpop.f32.mrb[0].mxu0
    %1138 = vmatprep.mubr.f32.mxu0 0.0
    %1139 = vmatmul.mubr.f32.gmra.mrb[0].mxu0 %v979
    %v1140 = vpop.f32.mrb[0].mxu0
    %v1141 = vadd.f32 0.0, %v1140
    %v1142 = vpop.f32.mrb[0].mxu0
    %1143 = vmatprep.mubr.f32.mxu0 0.0
    %1144 = vmatmul.mubr.f32.gmra.mrb[0].mxu0 %v982
    %v1145 = vpop.f32.mrb[0].mxu0
    %v1146 = vadd.f32 0.0, %v1145
    %v1147 = vpop.f32.mrb[0].mxu0
    %1148 = vmatprep.mubr.f32.mxu0 0.0
    %1149 = vmatmul.mubr.f32.gmra.mrb[0].mxu0 %v985
    %v1150 = vpop.f32.mrb[0].mxu0
    %v1151 = vadd.f32 0.0, %v1150
    %v1152 = vpop.f32.mrb[0].mxu0
    %1153 = vmatprep.mubr.f32.mxu0 0.0
    %1154 = vmatmul.mubr.f32.gmra.mrb[0].mxu0 %v988
    %v1155 = vpop.f32.mrb[0].mxu0
    %v1156 = vadd.f32 0.0, %v1155
    %v1157 = vpop.f32.mrb[0].mxu0
    %1158 = vmatprep.mubr.f32.mxu0 0.0
    %1159 = vmatmul.mubr.f32.gmra.mrb[0].mxu0 %v991
    %v1160 = vpop.f32.mrb[0].mxu0
    %v1161 = vadd.f32 0.0, %v1160
    %v1162 = vpop.f32.mrb[0].mxu0
    %1163 = vmatprep.mubr.f32.mxu0 0.0
    %1164 = vmatmul.mubr.f32.gmra.mrb[0].mxu0 %v994
    %v1165 = vpop.f32.mrb[0].mxu0
    %v1166 = vadd.f32 0.0, %v1165
    %v1167 = vpop.f32.mrb[0].mxu0
    %1168 = vmatprep.mubr.f32.mxu0 0.0
    %1169 = vmatmul.mubr.f32.gmra.mrb[0].mxu0 %v997
    %v1170 = vpop.f32.mrb[0].mxu0
    %v1171 = vadd.f32 0.0, %v1170
    %v1172 = vpop.f32.mrb[0].mxu0
    %1173 = vmatprep.mubr.f32.mxu0 0.0
    %1174 = vmatmul.mubr.f32.gmra.mrb[0].mxu0 %v1000
    %v1175 = vpop.f32.mrb[0].mxu0
    %v1176 = vadd.f32 0.0, %v1175
    %v1177 = vpop.f32.mrb[0].mxu0
    %1178 = vmatprep.mubr.f32.mxu0 0.0
    %1179 = vmatmul.mubr.f32.gmra.mrb[0].mxu0 %v1003
    %v1180 = vpop.f32.mrb[0].mxu0
    %v1181 = vadd.f32 0.0, %v1180
    %v1182 = vpop.f32.mrb[0].mxu0
    %1183 = vmatprep.mubr.f32.mxu0 0.0
    %1184 = vmatmul.mubr.f32.gmra.mrb[0].mxu0 %v1006
    %v1185 = vpop.f32.mrb[0].mxu0
    %v1186 = vadd.f32 0.0, %v1185
    %v1187 = vpop.f32.mrb[0].mxu0
    %1188 = vmatprep.mubr.f32.mxu0 0.0
    %1189 = vmatmul.mubr.f32.gmra.mrb[0].mxu0 %v1009
    %v1190 = vpop.f32.mrb[0].mxu0
    %v1191 = vadd.f32 0.0, %v1190
    %v1192 = vpop.f32.mrb[0].mxu0
    %1193 = vmatprep.mubr.f32.mxu0 0.0
    %1194 = vmatmul.mubr.f32.gmra.mrb[0].mxu0 %v1012
    %v1195 = vpop.f32.mrb[0].mxu0
    %v1196 = vadd.f32 0.0, %v1195
    %v1197 = vpop.f32.mrb[0].mxu0
    %1198 = vdwg.mxu0
    %1199 = vmatprep.subr.mxu0 0.0
    %1200 = vmatpush1.msra.mxu0 %v1081
    %1201 = vmatprep.subr.mxu0 0.0
    %1202 = vmatpush1.msra.mxu0 %v1086
    %1203 = vmatprep.subr.mxu0 0.0
    %1204 = vmatpush1.msra.mxu0 %v1091
    %1205 = vmatprep.subr.mxu0 0.0
    %1206 = vmatpush1.msra.mxu0 %v1096
    %1207 = vmatprep.subr.mxu0 0.0
    %1208 = vmatpush1.msra.mxu0 %v1101
    %1209 = vmatprep.subr.mxu0 0.0
    %1210 = vmatpush1.msra.mxu0 %v1106
    %1211 = vmatprep.subr.mxu0 0.0
    %1212 = vmatpush1.msra.mxu0 %v1111
    %1213 = vmatprep.subr.mxu0 0.0
    %1214 = vmatpush1.msra.mxu0 %v1116
    %1215 = vmatprep.subr.mxu0 0.0
    %1216 = vmatpush1.msra.mxu0 %v1121
    %1217 = vmatprep.subr.mxu0 0.0
    %1218 = vmatpush1.msra.mxu0 %v1126
    %1219 = vmatprep.subr.mxu0 0.0
    %1220 = vmatpush1.msra.mxu0 %v1131
    %1221 = vmatprep.subr.mxu0 0.0
    %1222 = vmatpush1.msra.mxu0 %v1136
    %1223 = vmatprep.subr.mxu0 0.0
    %1224 = vmatpush1.msra.mxu0 %v1141
    %1225 = vmatprep.subr.mxu0 0.0
    %1226 = vmatpush1.msra.mxu0 %v1146
    %1227 = vmatprep.subr.mxu0 0.0
    %1228 = vmatpush1.msra.mxu0 %v1151
    %1229 = vmatprep.subr.mxu0 0.0
    %1230 = vmatpush1.msra.mxu0 %v1156
    %1231 = vmatprep.subr.mxu0 0.0
    %1232 = vmatpush1.msra.mxu0 %v1161
    %1233 = vmatprep.subr.mxu0 0.0
    %1234 = vmatpush1.msra.mxu0 %v1166
    %1235 = vmatprep.subr.mxu0 0.0
    %1236 = vmatpush1.msra.mxu0 %v1171
    %1237 = vmatprep.subr.mxu0 0.0
    %1238 = vmatpush1.msra.mxu0 %v1176
    %1239 = vmatprep.subr.mxu0 0.0
    %1240 = vmatpush1.msra.mxu0 %v1181
    %1241 = vmatprep.subr.mxu0 0.0
    %1242 = vmatpush1.msra.mxu0 %v1186
    %1243 = vmatprep.subr.mxu0 0.0
    %1244 = vmatpush1.msra.mxu0 %v1191
    %1245 = vmatprep.subr.mxu0 0.0
    %1246 = vmatpush1.msra.mxu0 %v1196
    %1247 = vmatprep.subr.mxu0 0.0
    %1248 = vmatpush1.msra.mxu0 0.0
    %1249 = vmatprep.subr.mxu0 0.0
    %1250 = vmatpush1.msra.mxu0 0.0
    %1251 = vmatprep.subr.mxu0 0.0
    %1252 = vmatpush1.msra.mxu0 0.0
    %1253 = vmatprep.subr.mxu0 0.0
    %1254 = vmatpush1.msra.mxu0 0.0
    %1255 = vmatprep.subr.mxu0 0.0
    %1256 = vmatpush1.msra.mxu0 0.0
    %1257 = vmatprep.subr.mxu0 0.0
    %1258 = vmatpush1.msra.mxu0 0.0
    %1259 = vmatprep.subr.mxu0 0.0
    %1260 = vmatpush1.msra.mxu0 0.0
    %1261 = vmatprep.subr.mxu0 0.0
    %1262 = vmatpush1.msra.mxu0 0.0
    %1263 = vmatprep.mubr.f32.mxu0 %v376
    %1264 = vmatmul.mubr.f32.gmra.mrb[0].mxu0 %v40
    %v1265 = vpop.f32.mrb[0].mxu0
    %v1266 = vadd.f32 0.0, %v1265
    %v1267 = vpop.f32.mrb[0].mxu0
    %1268 = vmatprep.mubr.f32.mxu0 %v379
    %1269 = vmatmul.mubr.f32.gmra.mrb[0].mxu0 %v42
    %v1270 = vpop.f32.mrb[0].mxu0
    %v1271 = vadd.f32 0.0, %v1270
    %v1272 = vpop.f32.mrb[0].mxu0
    %1273 = vmatprep.mubr.f32.mxu0 %v382
    %1274 = vmatmul.mubr.f32.gmra.mrb[0].mxu0 %v44
    %v1275 = vpop.f32.mrb[0].mxu0
    %v1276 = vadd.f32 0.0, %v1275
    %v1277 = vpop.f32.mrb[0].mxu0
    %1278 = vmatprep.mubr.f32.mxu0 %v385
    %1279 = vmatmul.mubr.f32.gmra.mrb[0].mxu0 %v46
    %v1280 = vpop.f32.mrb[0].mxu0
    %v1281 = vadd.f32 0.0, %v1280
    %v1282 = vpop.f32.mrb[0].mxu0
    %1283 = vmatprep.mubr.f32.mxu0 %v388
    %1284 = vmatmul.mubr.f32.gmra.mrb[0].mxu0 %v48
    %v1285 = vpop.f32.mrb[0].mxu0
    %v1286 = vadd.f32 0.0, %v1285
    %v1287 = vpop.f32.mrb[0].mxu0
    %1288 = vmatprep.mubr.f32.mxu0 %v391
    %1289 = vmatmul.mubr.f32.gmra.mrb[0].mxu0 %v50
    %v1290 = vpop.f32.mrb[0].mxu0
    %v1291 = vadd.f32 0.0, %v1290
    %v1292 = vpop.f32.mrb[0].mxu0
    %1293 = vmatprep.mubr.f32.mxu0 %v394
    %1294 = vmatmul.mubr.f32.gmra.mrb[0].mxu0 %v52
    %v1295 = vpop.f32.mrb[0].mxu0
    %v1296 = vadd.f32 0.0, %v1295
    %v1297 = vpop.f32.mrb[0].mxu0
    %1298 = vmatprep.mubr.f32.mxu0 %v397
    %1299 = vmatmul.mubr.f32.gmra.mrb[0].mxu0 %v54
    %v1300 = vpop.f32.mrb[0].mxu0
    %v1301 = vadd.f32 0.0, %v1300
    %v1302 = vpop.f32.mrb[0].mxu0
    %1303 = vmatprep.mubr.f32.mxu0 %v400
    %1304 = vmatmul.mubr.f32.gmra.mrb[0].mxu0 %v56
    %v1305 = vpop.f32.mrb[0].mxu0
    %v1306 = vadd.f32 0.0, %v1305
    %v1307 = vpop.f32.mrb[0].mxu0
    %1308 = vmatprep.mubr.f32.mxu0 %v403
    %1309 = vmatmul.mubr.f32.gmra.mrb[0].mxu0 %v58
    %v1310 = vpop.f32.mrb[0].mxu0
    %v1311 = vadd.f32 0.0, %v1310
    %v1312 = vpop.f32.mrb[0].mxu0
    %1313 = vmatprep.mubr.f32.mxu0 %v406
    %1314 = vmatmul.mubr.f32.gmra.mrb[0].mxu0 %v60
    %v1315 = vpop.f32.mrb[0].mxu0
    %v1316 = vadd.f32 0.0, %v1315
    %v1317 = vpop.f32.mrb[0].mxu0
    %1318 = vmatprep.mubr.f32.mxu0 %v409
    %1319 = vmatmul.mubr.f32.gmra.mrb[0].mxu0 %v62
    %v1320 = vpop.f32.mrb[0].mxu0
    %v1321 = vadd.f32 0.0, %v1320
    %v1322 = vpop.f32.mrb[0].mxu0
    %1323 = vdwg.mxu0
    %v1324 = vmul.f32 %v88, %v88
    %v1325 = vmul.f32 %v89, %v89
    %v1326 = vmul.f32 %v90, %v90
    %v1327 = vmul.f32 %v91, %v91
    %v1328 = vmul.f32 %v92, %v92
    %v1329 = vmul.f32 %v93, %v93
    %v1330 = vmul.f32 %v94, %v94
    %v1331 = vmul.f32 %v95, %v95
    %v1332 = vmul.f32 %v96, %v96
    %v1333 = vmul.f32 %v97, %v97
    %v1334 = vmul.f32 %v98, %v98
    %v1335 = vmul.f32 %v99, %v99
    %v1336 = vmul.f32 %v100, %v100
    %v1337 = vmul.f32 %v101, %v101
    %v1338 = vmul.f32 %v102, %v102
    %v1339 = vmul.f32 %v103, %v103
    %v1340 = vmul.f32 %v104, %v104
    %v1341 = vmul.f32 %v105, %v105
    %v1342 = vmul.f32 %v106, %v106
    %v1343 = vmul.f32 %v107, %v107
    %v1344 = vmul.f32 %v108, %v108
    %v1345 = vmul.f32 %v109, %v109
    %v1346 = vmul.f32 %v110, %v110
    %v1347 = vmul.f32 %v111, %v111
    %v1349 = vsel %vm112, %v1324, 0
    %v1352 = vsel %vm112, %v1325, 0
    %v1355 = vsel %vm112, %v1326, 0
    %v1358 = vsel %vm112, %v1327, 0
    %v1361 = vsel %vm112, %v1328, 0
    %v1364 = vsel %vm112, %v1329, 0
    %v1367 = vsel %vm112, %v1330, 0
    %v1370 = vsel %vm112, %v1331, 0
    %v1373 = vsel %vm112, %v1332, 0
    %v1376 = vsel %vm112, %v1333, 0
    %v1379 = vsel %vm112, %v1334, 0
    %v1382 = vsel %vm112, %v1335, 0
    %v1385 = vsel %vm112, %v1336, 0
    %v1388 = vsel %vm112, %v1337, 0
    %v1391 = vsel %vm112, %v1338, 0
    %v1394 = vsel %vm112, %v1339, 0
    %v1397 = vsel %vm112, %v1340, 0
    %v1400 = vsel %vm112, %v1341, 0
    %v1403 = vsel %vm112, %v1342, 0
    %v1406 = vsel %vm112, %v1343, 0
    %v1409 = vsel %vm112, %v1344, 0
    %v1412 = vsel %vm112, %v1345, 0
    %v1415 = vsel %vm112, %v1346, 0
    %v1418 = vsel %vm112, %v1347, 0
    %1420 = vmatprep.subr.mxu0 0.0
    %1421 = vmatpush1.msra.mxu0 %v36
    %1422 = vmatprep.subr.mxu0 0.0
    %1423 = vmatpush1.msra.mxu0 %v37
    %1424 = vmatprep.subr.mxu0 0.0
    %1425 = vmatpush1.msra.mxu0 %v38
    %1426 = vmatprep.subr.mxu0 0.0
    %1427 = vmatpush1.msra.mxu0 %v187
    %1428 = vmatprep.subr.mxu0 0.0
    %1429 = vmatpush1.msra.mxu0 0.0
    %1430 = vmatprep.subr.mxu0 0.0
    %1431 = vmatpush1.msra.mxu0 0.0
    %1432 = vmatprep.subr.mxu0 0.0
    %1433 = vmatpush1.msra.mxu0 0.0
    %1434 = vmatprep.subr.mxu0 0.0
    %1435 = vmatpush1.msra.mxu0 0.0
    %1436 = vmatprep.subr.mxu0 0.0
    %1437 = vmatpush1.msra.mxu0 0.0
    %1438 = vmatprep.subr.mxu0 0.0
    %1439 = vmatpush1.msra.mxu0 0.0
    %1440 = vmatprep.subr.mxu0 0.0
    %1441 = vmatpush1.msra.mxu0 0.0
    %1442 = vmatprep.subr.mxu0 0.0
    %1443 = vmatpush1.msra.mxu0 0.0
    %1444 = vmatprep.subr.mxu0 0.0
    %1445 = vmatpush1.msra.mxu0 0.0
    %1446 = vmatprep.subr.mxu0 0.0
    %1447 = vmatpush1.msra.mxu0 0.0
    %1448 = vmatprep.subr.mxu0 0.0
    %1449 = vmatpush1.msra.mxu0 0.0
    %1450 = vmatprep.subr.mxu0 0.0
    %1451 = vmatpush1.msra.mxu0 0.0
    %1452 = vmatprep.subr.mxu0 0.0
    %1453 = vmatpush1.msra.mxu0 0.0
    %1454 = vmatprep.subr.mxu0 0.0
    %1455 = vmatpush1.msra.mxu0 0.0
    %1456 = vmatprep.subr.mxu0 0.0
    %1457 = vmatpush1.msra.mxu0 0.0
    %1458 = vmatprep.subr.mxu0 0.0
    %1459 = vmatpush1.msra.mxu0 0.0
    %1460 = vmatprep.subr.mxu0 0.0
    %1461 = vmatpush1.msra.mxu0 0.0
    %1462 = vmatprep.subr.mxu0 0.0
    %1463 = vmatpush1.msra.mxu0 0.0
    %1464 = vmatprep.subr.mxu0 0.0
    %1465 = vmatpush1.msra.mxu0 0.0
    %1466 = vmatprep.subr.mxu0 0.0
    %1467 = vmatpush1.msra.mxu0 0.0
    %1468 = vmatprep.subr.mxu0 0.0
    %1469 = vmatpush1.msra.mxu0 0.0
    %1470 = vmatprep.subr.mxu0 0.0
    %1471 = vmatpush1.msra.mxu0 0.0
    %1472 = vmatprep.subr.mxu0 0.0
    %1473 = vmatpush1.msra.mxu0 0.0
    %1474 = vmatprep.subr.mxu0 0.0
    %1475 = vmatpush1.msra.mxu0 0.0
    %1476 = vmatprep.subr.mxu0 0.0
    %1477 = vmatpush1.msra.mxu0 0.0
    %1478 = vmatprep.subr.mxu0 0.0
    %1479 = vmatpush1.msra.mxu0 0.0
    %1480 = vmatprep.subr.mxu0 0.0
    %1481 = vmatpush1.msra.mxu0 0.0
    %1482 = vmatprep.subr.mxu0 0.0
    %1483 = vmatpush1.msra.mxu0 0.0
    %1484 = vmatprep.mubr.f32.mxu0 0.0
    %1485 = vmatmul.mubr.f32.gmra.mrb[0].mxu0 %v1349
    %v1486 = vpop.f32.mrb[0].mxu0
    %v1487 = vadd.f32 0.0, %v1486
    %v1488 = vpop.f32.mrb[0].mxu0
    %1489 = vmatprep.mubr.f32.mxu0 0.0
    %1490 = vmatmul.mubr.f32.gmra.mrb[0].mxu0 %v1352
    %v1491 = vpop.f32.mrb[0].mxu0
    %v1492 = vadd.f32 0.0, %v1491
    %v1493 = vpop.f32.mrb[0].mxu0
    %1494 = vmatprep.mubr.f32.mxu0 0.0
    %1495 = vmatmul.mubr.f32.gmra.mrb[0].mxu0 %v1355
    %v1496 = vpop.f32.mrb[0].mxu0
    %v1497 = vadd.f32 0.0, %v1496
    %v1498 = vpop.f32.mrb[0].mxu0
    %1499 = vmatprep.mubr.f32.mxu0 0.0
    %1500 = vmatmul.mubr.f32.gmra.mrb[0].mxu0 %v1358
    %v1501 = vpop.f32.mrb[0].mxu0
    %v1502 = vadd.f32 0.0, %v1501
    %v1503 = vpop.f32.mrb[0].mxu0
    %1504 = vmatprep.mubr.f32.mxu0 0.0
    %1505 = vmatmul.mubr.f32.gmra.mrb[0].mxu0 %v1361
    %v1506 = vpop.f32.mrb[0].mxu0
    %v1507 = vadd.f32 0.0, %v1506
    %v1508 = vpop.f32.mrb[0].mxu0
    %1509 = vmatprep.mubr.f32.mxu0 0.0
    %1510 = vmatmul.mubr.f32.gmra.mrb[0].mxu0 %v1364
    %v1511 = vpop.f32.mrb[0].mxu0
    %v1512 = vadd.f32 0.0, %v1511
    %v1513 = vpop.f32.mrb[0].mxu0
    %1514 = vmatprep.mubr.f32.mxu0 0.0
    %1515 = vmatmul.mubr.f32.gmra.mrb[0].mxu0 %v1367
    %v1516 = vpop.f32.mrb[0].mxu0
    %v1517 = vadd.f32 0.0, %v1516
    %v1518 = vpop.f32.mrb[0].mxu0
    %1519 = vmatprep.mubr.f32.mxu0 0.0
    %1520 = vmatmul.mubr.f32.gmra.mrb[0].mxu0 %v1370
    %v1521 = vpop.f32.mrb[0].mxu0
    %v1522 = vadd.f32 0.0, %v1521
    %v1523 = vpop.f32.mrb[0].mxu0
    %1524 = vmatprep.mubr.f32.mxu0 0.0
    %1525 = vmatmul.mubr.f32.gmra.mrb[0].mxu0 %v1373
    %v1526 = vpop.f32.mrb[0].mxu0
    %v1527 = vadd.f32 0.0, %v1526
    %v1528 = vpop.f32.mrb[0].mxu0
    %1529 = vmatprep.mubr.f32.mxu0 0.0
    %1530 = vmatmul.mubr.f32.gmra.mrb[0].mxu0 %v1376
    %v1531 = vpop.f32.mrb[0].mxu0
    %v1532 = vadd.f32 0.0, %v1531
    %v1533 = vpop.f32.mrb[0].mxu0
    %1534 = vmatprep.mubr.f32.mxu0 0.0
    %1535 = vmatmul.mubr.f32.gmra.mrb[0].mxu0 %v1379
    %v1536 = vpop.f32.mrb[0].mxu0
    %v1537 = vadd.f32 0.0, %v1536
    %v1538 = vpop.f32.mrb[0].mxu0
    %1539 = vmatprep.mubr.f32.mxu0 0.0
    %1540 = vmatmul.mubr.f32.gmra.mrb[0].mxu0 %v1382
    %v1541 = vpop.f32.mrb[0].mxu0
    %v1542 = vadd.f32 0.0, %v1541
    %v1543 = vpop.f32.mrb[0].mxu0
    %1544 = vmatprep.mubr.f32.mxu0 0.0
    %1545 = vmatmul.mubr.f32.gmra.mrb[0].mxu0 %v1385
    %v1546 = vpop.f32.mrb[0].mxu0
    %v1547 = vadd.f32 0.0, %v1546
    %v1548 = vpop.f32.mrb[0].mxu0
    %1549 = vmatprep.mubr.f32.mxu0 0.0
    %1550 = vmatmul.mubr.f32.gmra.mrb[0].mxu0 %v1388
    %v1551 = vpop.f32.mrb[0].mxu0
    %v1552 = vadd.f32 0.0, %v1551
    %v1553 = vpop.f32.mrb[0].mxu0
    %1554 = vmatprep.mubr.f32.mxu0 0.0
    %1555 = vmatmul.mubr.f32.gmra.mrb[0].mxu0 %v1391
    %v1556 = vpop.f32.mrb[0].mxu0
    %v1557 = vadd.f32 0.0, %v1556
    %v1558 = vpop.f32.mrb[0].mxu0
    %1559 = vmatprep.mubr.f32.mxu0 0.0
    %1560 = vmatmul.mubr.f32.gmra.mrb[0].mxu0 %v1394
    %v1561 = vpop.f32.mrb[0].mxu0
    %v1562 = vadd.f32 0.0, %v1561
    %v1563 = vpop.f32.mrb[0].mxu0
    %1564 = vmatprep.mubr.f32.mxu0 0.0
    %1565 = vmatmul.mubr.f32.gmra.mrb[0].mxu0 %v1397
    %v1566 = vpop.f32.mrb[0].mxu0
    %v1567 = vadd.f32 0.0, %v1566
    %v1568 = vpop.f32.mrb[0].mxu0
    %1569 = vmatprep.mubr.f32.mxu0 0.0
    %1570 = vmatmul.mubr.f32.gmra.mrb[0].mxu0 %v1400
    %v1571 = vpop.f32.mrb[0].mxu0
    %v1572 = vadd.f32 0.0, %v1571
    %v1573 = vpop.f32.mrb[0].mxu0
    %1574 = vmatprep.mubr.f32.mxu0 0.0
    %1575 = vmatmul.mubr.f32.gmra.mrb[0].mxu0 %v1403
    %v1576 = vpop.f32.mrb[0].mxu0
    %v1577 = vadd.f32 0.0, %v1576
    %v1578 = vpop.f32.mrb[0].mxu0
    %1579 = vmatprep.mubr.f32.mxu0 0.0
    %1580 = vmatmul.mubr.f32.gmra.mrb[0].mxu0 %v1406
    %v1581 = vpop.f32.mrb[0].mxu0
    %v1582 = vadd.f32 0.0, %v1581
    %v1583 = vpop.f32.mrb[0].mxu0
    %1584 = vmatprep.mubr.f32.mxu0 0.0
    %1585 = vmatmul.mubr.f32.gmra.mrb[0].mxu0 %v1409
    %v1586 = vpop.f32.mrb[0].mxu0
    %v1587 = vadd.f32 0.0, %v1586
    %v1588 = vpop.f32.mrb[0].mxu0
    %1589 = vmatprep.mubr.f32.mxu0 0.0
    %1590 = vmatmul.mubr.f32.gmra.mrb[0].mxu0 %v1412
    %v1591 = vpop.f32.mrb[0].mxu0
    %v1592 = vadd.f32 0.0, %v1591
    %v1593 = vpop.f32.mrb[0].mxu0
    %1594 = vmatprep.mubr.f32.mxu0 0.0
    %1595 = vmatmul.mubr.f32.gmra.mrb[0].mxu0 %v1415
    %v1596 = vpop.f32.mrb[0].mxu0
    %v1597 = vadd.f32 0.0, %v1596
    %v1598 = vpop.f32.mrb[0].mxu0
    %1599 = vmatprep.mubr.f32.mxu0 0.0
    %1600 = vmatmul.mubr.f32.gmra.mrb[0].mxu0 %v1418
    %v1601 = vpop.f32.mrb[0].mxu0
    %v1602 = vadd.f32 0.0, %v1601
    %v1603 = vpop.f32.mrb[0].mxu0
    %1604 = vdwg.mxu0
    %1605 = vmatprep.subr.mxu0 0.0
    %1606 = vmatpush1.msra.mxu0 %v1487
    %1607 = vmatprep.subr.mxu0 0.0
    %1608 = vmatpush1.msra.mxu0 %v1492
    %1609 = vmatprep.subr.mxu0 0.0
    %1610 = vmatpush1.msra.mxu0 %v1497
    %1611 = vmatprep.subr.mxu0 0.0
    %1612 = vmatpush1.msra.mxu0 %v1502
    %1613 = vmatprep.subr.mxu0 0.0
    %1614 = vmatpush1.msra.mxu0 %v1507
    %1615 = vmatprep.subr.mxu0 0.0
    %1616 = vmatpush1.msra.mxu0 %v1512
    %1617 = vmatprep.subr.mxu0 0.0
    %1618 = vmatpush1.msra.mxu0 %v1517
    %1619 = vmatprep.subr.mxu0 0.0
    %1620 = vmatpush1.msra.mxu0 %v1522
    %1621 = vmatprep.subr.mxu0 0.0
    %1622 = vmatpush1.msra.mxu0 %v1527
    %1623 = vmatprep.subr.mxu0 0.0
    %1624 = vmatpush1.msra.mxu0 %v1532
    %1625 = vmatprep.subr.mxu0 0.0
    %1626 = vmatpush1.msra.mxu0 %v1537
    %1627 = vmatprep.subr.mxu0 0.0
    %1628 = vmatpush1.msra.mxu0 %v1542
    %1629 = vmatprep.subr.mxu0 0.0
    %1630 = vmatpush1.msra.mxu0 %v1547
    %1631 = vmatprep.subr.mxu0 0.0
    %1632 = vmatpush1.msra.mxu0 %v1552
    %1633 = vmatprep.subr.mxu0 0.0
    %1634 = vmatpush1.msra.mxu0 %v1557
    %1635 = vmatprep.subr.mxu0 0.0
    %1636 = vmatpush1.msra.mxu0 %v1562
    %1637 = vmatprep.subr.mxu0 0.0
    %1638 = vmatpush1.msra.mxu0 %v1567
    %1639 = vmatprep.subr.mxu0 0.0
    %1640 = vmatpush1.msra.mxu0 %v1572
    %1641 = vmatprep.subr.mxu0 0.0
    %1642 = vmatpush1.msra.mxu0 %v1577
    %1643 = vmatprep.subr.mxu0 0.0
    %1644 = vmatpush1.msra.mxu0 %v1582
    %1645 = vmatprep.subr.mxu0 0.0
    %1646 = vmatpush1.msra.mxu0 %v1587
    %1647 = vmatprep.subr.mxu0 0.0
    %1648 = vmatpush1.msra.mxu0 %v1592
    %1649 = vmatprep.subr.mxu0 0.0
    %1650 = vmatpush1.msra.mxu0 %v1597
    %1651 = vmatprep.subr.mxu0 0.0
    %1652 = vmatpush1.msra.mxu0 %v1602
    %1653 = vmatprep.subr.mxu0 0.0
    %1654 = vmatpush1.msra.mxu0 0.0
    %1655 = vmatprep.subr.mxu0 0.0
    %1656 = vmatpush1.msra.mxu0 0.0
    %1657 = vmatprep.subr.mxu0 0.0
    %1658 = vmatpush1.msra.mxu0 0.0
    %1659 = vmatprep.subr.mxu0 0.0
    %1660 = vmatpush1.msra.mxu0 0.0
    %1661 = vmatprep.subr.mxu0 0.0
    %1662 = vmatpush1.msra.mxu0 0.0
    %1663 = vmatprep.subr.mxu0 0.0
    %1664 = vmatpush1.msra.mxu0 0.0
    %1665 = vmatprep.subr.mxu0 0.0
    %1666 = vmatpush1.msra.mxu0 0.0
    %1667 = vmatprep.subr.mxu0 0.0
    %1668 = vmatpush1.msra.mxu0 0.0
    %1669 = vmatprep.mubr.f32.mxu0 %v376
    %1670 = vmatmul.mubr.f32.gmra.mrb[0].mxu0 %v40
    %v1671 = vpop.f32.mrb[0].mxu0
    %v1672 = vadd.f32 0.0, %v1671
    %v1673 = vpop.f32.mrb[0].mxu0
    %1674 = vmatprep.mubr.f32.mxu0 %v379
    %1675 = vmatmul.mubr.f32.gmra.mrb[0].mxu0 %v42
    %v1676 = vpop.f32.mrb[0].mxu0
    %v1677 = vadd.f32 0.0, %v1676
    %v1678 = vpop.f32.mrb[0].mxu0
    %1679 = vmatprep.mubr.f32.mxu0 %v382
    %1680 = vmatmul.mubr.f32.gmra.mrb[0].mxu0 %v44
    %v1681 = vpop.f32.mrb[0].mxu0
    %v1682 = vadd.f32 0.0, %v1681
    %v1683 = vpop.f32.mrb[0].mxu0
    %1684 = vmatprep.mubr.f32.mxu0 %v385
    %1685 = vmatmul.mubr.f32.gmra.mrb[0].mxu0 %v46
    %v1686 = vpop.f32.mrb[0].mxu0
    %v1687 = vadd.f32 0.0, %v1686
    %v1688 = vpop.f32.mrb[0].mxu0
    %1689 = vmatprep.mubr.f32.mxu0 %v388
    %1690 = vmatmul.mubr.f32.gmra.mrb[0].mxu0 %v48
    %v1691 = vpop.f32.mrb[0].mxu0
    %v1692 = vadd.f32 0.0, %v1691
    %v1693 = vpop.f32.mrb[0].mxu0
    %1694 = vmatprep.mubr.f32.mxu0 %v391
    %1695 = vmatmul.mubr.f32.gmra.mrb[0].mxu0 %v50
    %v1696 = vpop.f32.mrb[0].mxu0
    %v1697 = vadd.f32 0.0, %v1696
    %v1698 = vpop.f32.mrb[0].mxu0
    %1699 = vmatprep.mubr.f32.mxu0 %v394
    %1700 = vmatmul.mubr.f32.gmra.mrb[0].mxu0 %v52
    %v1701 = vpop.f32.mrb[0].mxu0
    %v1702 = vadd.f32 0.0, %v1701
    %v1703 = vpop.f32.mrb[0].mxu0
    %1704 = vmatprep.mubr.f32.mxu0 %v397
    %1705 = vmatmul.mubr.f32.gmra.mrb[0].mxu0 %v54
    %v1706 = vpop.f32.mrb[0].mxu0
    %v1707 = vadd.f32 0.0, %v1706
    %v1708 = vpop.f32.mrb[0].mxu0
    %1709 = vmatprep.mubr.f32.mxu0 %v400
    %1710 = vmatmul.mubr.f32.gmra.mrb[0].mxu0 %v56
    %v1711 = vpop.f32.mrb[0].mxu0
    %v1712 = vadd.f32 0.0, %v1711
    %v1713 = vpop.f32.mrb[0].mxu0
    %1714 = vmatprep.mubr.f32.mxu0 %v403
    %1715 = vmatmul.mubr.f32.gmra.mrb[0].mxu0 %v58
    %v1716 = vpop.f32.mrb[0].mxu0
    %v1717 = vadd.f32 0.0, %v1716
    %v1718 = vpop.f32.mrb[0].mxu0
    %1719 = vmatprep.mubr.f32.mxu0 %v406
    %1720 = vmatmul.mubr.f32.gmra.mrb[0].mxu0 %v60
    %v1721 = vpop.f32.mrb[0].mxu0
    %v1722 = vadd.f32 0.0, %v1721
    %v1723 = vpop.f32.mrb[0].mxu0
    %1724 = vmatprep.mubr.f32.mxu0 %v409
    %1725 = vmatmul.mubr.f32.gmra.mrb[0].mxu0 %v62
    %v1726 = vpop.f32.mrb[0].mxu0
    %v1727 = vadd.f32 0.0, %v1726
    %v1728 = vpop.f32.mrb[0].mxu0
    %1729 = vdwg.mxu0
    %v1730 = vmul.f32 %v64, %v88
    %v1731 = vmul.f32 %v65, %v89
    %v1732 = vmul.f32 %v66, %v90
    %v1733 = vmul.f32 %v67, %v91
    %v1734 = vmul.f32 %v68, %v92
    %v1735 = vmul.f32 %v69, %v93
    %v1736 = vmul.f32 %v70, %v94
    %v1737 = vmul.f32 %v71, %v95
    %v1738 = vmul.f32 %v72, %v96
    %v1739 = vmul.f32 %v73, %v97
    %v1740 = vmul.f32 %v74, %v98
    %v1741 = vmul.f32 %v75, %v99
    %v1742 = vmul.f32 %v76, %v100
    %v1743 = vmul.f32 %v77, %v101
    %v1744 = vmul.f32 %v78, %v102
    %v1745 = vmul.f32 %v79, %v103
    %v1746 = vmul.f32 %v80, %v104
    %v1747 = vmul.f32 %v81, %v105
    %v1748 = vmul.f32 %v82, %v106
    %v1749 = vmul.f32 %v83, %v107
    %v1750 = vmul.f32 %v84, %v108
    %v1751 = vmul.f32 %v85, %v109
    %v1752 = vmul.f32 %v86, %v110
    %v1753 = vmul.f32 %v87, %v111
    %v1755 = vsel %vm112, %v1730, 0
    %v1758 = vsel %vm112, %v1731, 0
    %v1761 = vsel %vm112, %v1732, 0
    %v1764 = vsel %vm112, %v1733, 0
    %v1767 = vsel %vm112, %v1734, 0
    %v1770 = vsel %vm112, %v1735, 0
    %v1773 = vsel %vm112, %v1736, 0
    %v1776 = vsel %vm112, %v1737, 0
    %v1779 = vsel %vm112, %v1738, 0
    %v1782 = vsel %vm112, %v1739, 0
    %v1785 = vsel %vm112, %v1740, 0
    %v1788 = vsel %vm112, %v1741, 0
    %v1791 = vsel %vm112, %v1742, 0
    %v1794 = vsel %vm112, %v1743, 0
    %v1797 = vsel %vm112, %v1744, 0
    %v1800 = vsel %vm112, %v1745, 0
    %v1803 = vsel %vm112, %v1746, 0
    %v1806 = vsel %vm112, %v1747, 0
    %v1809 = vsel %vm112, %v1748, 0
    %v1812 = vsel %vm112, %v1749, 0
    %v1815 = vsel %vm112, %v1750, 0
    %v1818 = vsel %vm112, %v1751, 0
    %v1821 = vsel %vm112, %v1752, 0
    %v1824 = vsel %vm112, %v1753, 0
    %1826 = vmatprep.subr.mxu0 0.0
    %1827 = vmatpush1.msra.mxu0 %v36
    %1828 = vmatprep.subr.mxu0 0.0
    %1829 = vmatpush1.msra.mxu0 %v37
    %1830 = vmatprep.subr.mxu0 0.0
    %1831 = vmatpush1.msra.mxu0 %v38
    %1832 = vmatprep.subr.mxu0 0.0
    %1833 = vmatpush1.msra.mxu0 %v187
    %1834 = vmatprep.subr.mxu0 0.0
    %1835 = vmatpush1.msra.mxu0 0.0
    %1836 = vmatprep.subr.mxu0 0.0
    %1837 = vmatpush1.msra.mxu0 0.0
    %1838 = vmatprep.subr.mxu0 0.0
    %1839 = vmatpush1.msra.mxu0 0.0
    %1840 = vmatprep.subr.mxu0 0.0
    %1841 = vmatpush1.msra.mxu0 0.0
    %1842 = vmatprep.subr.mxu0 0.0
    %1843 = vmatpush1.msra.mxu0 0.0
    %1844 = vmatprep.subr.mxu0 0.0
    %1845 = vmatpush1.msra.mxu0 0.0
    %1846 = vmatprep.subr.mxu0 0.0
    %1847 = vmatpush1.msra.mxu0 0.0
    %1848 = vmatprep.subr.mxu0 0.0
    %1849 = vmatpush1.msra.mxu0 0.0
    %1850 = vmatprep.subr.mxu0 0.0
    %1851 = vmatpush1.msra.mxu0 0.0
    %1852 = vmatprep.subr.mxu0 0.0
    %1853 = vmatpush1.msra.mxu0 0.0
    %1854 = vmatprep.subr.mxu0 0.0
    %1855 = vmatpush1.msra.mxu0 0.0
    %1856 = vmatprep.subr.mxu0 0.0
    %1857 = vmatpush1.msra.mxu0 0.0
    %1858 = vmatprep.subr.mxu0 0.0
    %1859 = vmatpush1.msra.mxu0 0.0
    %1860 = vmatprep.subr.mxu0 0.0
    %1861 = vmatpush1.msra.mxu0 0.0
    %1862 = vmatprep.subr.mxu0 0.0
    %1863 = vmatpush1.msra.mxu0 0.0
    %1864 = vmatprep.subr.mxu0 0.0
    %1865 = vmatpush1.msra.mxu0 0.0
    %1866 = vmatprep.subr.mxu0 0.0
    %1867 = vmatpush1.msra.mxu0 0.0
    %1868 = vmatprep.subr.mxu0 0.0
    %1869 = vmatpush1.msra.mxu0 0.0
    %1870 = vmatprep.subr.mxu0 0.0
    %1871 = vmatpush1.msra.mxu0 0.0
    %1872 = vmatprep.subr.mxu0 0.0
    %1873 = vmatpush1.msra.mxu0 0.0
    %1874 = vmatprep.subr.mxu0 0.0
    %1875 = vmatpush1.msra.mxu0 0.0
    %1876 = vmatprep.subr.mxu0 0.0
    %1877 = vmatpush1.msra.mxu0 0.0
    %1878 = vmatprep.subr.mxu0 0.0
    %1879 = vmatpush1.msra.mxu0 0.0
    %1880 = vmatprep.subr.mxu0 0.0
    %1881 = vmatpush1.msra.mxu0 0.0
    %1882 = vmatprep.subr.mxu0 0.0
    %1883 = vmatpush1.msra.mxu0 0.0
    %1884 = vmatprep.subr.mxu0 0.0
    %1885 = vmatpush1.msra.mxu0 0.0
    %1886 = vmatprep.subr.mxu0 0.0
    %1887 = vmatpush1.msra.mxu0 0.0
    %1888 = vmatprep.subr.mxu0 0.0
    %1889 = vmatpush1.msra.mxu0 0.0
    %1890 = vmatprep.mubr.f32.mxu0 0.0
    %1891 = vmatmul.mubr.f32.gmra.mrb[0].mxu0 %v1755
    %v1892 = vpop.f32.mrb[0].mxu0
    %v1893 = vadd.f32 0.0, %v1892
    %v1894 = vpop.f32.mrb[0].mxu0
    %1895 = vmatprep.mubr.f32.mxu0 0.0
    %1896 = vmatmul.mubr.f32.gmra.mrb[0].mxu0 %v1758
    %v1897 = vpop.f32.mrb[0].mxu0
    %v1898 = vadd.f32 0.0, %v1897
    %v1899 = vpop.f32.mrb[0].mxu0
    %1900 = vmatprep.mubr.f32.mxu0 0.0
    %1901 = vmatmul.mubr.f32.gmra.mrb[0].mxu0 %v1761
    %v1902 = vpop.f32.mrb[0].mxu0
    %v1903 = vadd.f32 0.0, %v1902
    %v1904 = vpop.f32.mrb[0].mxu0
    %1905 = vmatprep.mubr.f32.mxu0 0.0
    %1906 = vmatmul.mubr.f32.gmra.mrb[0].mxu0 %v1764
    %v1907 = vpop.f32.mrb[0].mxu0
    %v1908 = vadd.f32 0.0, %v1907
    %v1909 = vpop.f32.mrb[0].mxu0
    %1910 = vmatprep.mubr.f32.mxu0 0.0
    %1911 = vmatmul.mubr.f32.gmra.mrb[0].mxu0 %v1767
    %v1912 = vpop.f32.mrb[0].mxu0
    %v1913 = vadd.f32 0.0, %v1912
    %v1914 = vpop.f32.mrb[0].mxu0
    %1915 = vmatprep.mubr.f32.mxu0 0.0
    %1916 = vmatmul.mubr.f32.gmra.mrb[0].mxu0 %v1770
    %v1917 = vpop.f32.mrb[0].mxu0
    %v1918 = vadd.f32 0.0, %v1917
    %v1919 = vpop.f32.mrb[0].mxu0
    %1920 = vmatprep.mubr.f32.mxu0 0.0
    %1921 = vmatmul.mubr.f32.gmra.mrb[0].mxu0 %v1773
    %v1922 = vpop.f32.mrb[0].mxu0
    %v1923 = vadd.f32 0.0, %v1922
    %v1924 = vpop.f32.mrb[0].mxu0
    %1925 = vmatprep.mubr.f32.mxu0 0.0
    %1926 = vmatmul.mubr.f32.gmra.mrb[0].mxu0 %v1776
    %v1927 = vpop.f32.mrb[0].mxu0
    %v1928 = vadd.f32 0.0, %v1927
    %v1929 = vpop.f32.mrb[0].mxu0
    %1930 = vmatprep.mubr.f32.mxu0 0.0
    %1931 = vmatmul.mubr.f32.gmra.mrb[0].mxu0 %v1779
    %v1932 = vpop.f32.mrb[0].mxu0
    %v1933 = vadd.f32 0.0, %v1932
    %v1934 = vpop.f32.mrb[0].mxu0
    %1935 = vmatprep.mubr.f32.mxu0 0.0
    %1936 = vmatmul.mubr.f32.gmra.mrb[0].mxu0 %v1782
    %v1937 = vpop.f32.mrb[0].mxu0
    %v1938 = vadd.f32 0.0, %v1937
    %v1939 = vpop.f32.mrb[0].mxu0
    %1940 = vmatprep.mubr.f32.mxu0 0.0
    %1941 = vmatmul.mubr.f32.gmra.mrb[0].mxu0 %v1785
    %v1942 = vpop.f32.mrb[0].mxu0
    %v1943 = vadd.f32 0.0, %v1942
    %v1944 = vpop.f32.mrb[0].mxu0
    %1945 = vmatprep.mubr.f32.mxu0 0.0
    %1946 = vmatmul.mubr.f32.gmra.mrb[0].mxu0 %v1788
    %v1947 = vpop.f32.mrb[0].mxu0
    %v1948 = vadd.f32 0.0, %v1947
    %v1949 = vpop.f32.mrb[0].mxu0
    %1950 = vmatprep.mubr.f32.mxu0 0.0
    %1951 = vmatmul.mubr.f32.gmra.mrb[0].mxu0 %v1791
    %v1952 = vpop.f32.mrb[0].mxu0
    %v1953 = vadd.f32 0.0, %v1952
    %v1954 = vpop.f32.mrb[0].mxu0
    %1955 = vmatprep.mubr.f32.mxu0 0.0
    %1956 = vmatmul.mubr.f32.gmra.mrb[0].mxu0 %v1794
    %v1957 = vpop.f32.mrb[0].mxu0
    %v1958 = vadd.f32 0.0, %v1957
    %v1959 = vpop.f32.mrb[0].mxu0
    %1960 = vmatprep.mubr.f32.mxu0 0.0
    %1961 = vmatmul.mubr.f32.gmra.mrb[0].mxu0 %v1797
    %v1962 = vpop.f32.mrb[0].mxu0
    %v1963 = vadd.f32 0.0, %v1962
    %v1964 = vpop.f32.mrb[0].mxu0
    %1965 = vmatprep.mubr.f32.mxu0 0.0
    %1966 = vmatmul.mubr.f32.gmra.mrb[0].mxu0 %v1800
    %v1967 = vpop.f32.mrb[0].mxu0
    %v1968 = vadd.f32 0.0, %v1967
    %v1969 = vpop.f32.mrb[0].mxu0
    %1970 = vmatprep.mubr.f32.mxu0 0.0
    %1971 = vmatmul.mubr.f32.gmra.mrb[0].mxu0 %v1803
    %v1972 = vpop.f32.mrb[0].mxu0
    %v1973 = vadd.f32 0.0, %v1972
    %v1974 = vpop.f32.mrb[0].mxu0
    %1975 = vmatprep.mubr.f32.mxu0 0.0
    %1976 = vmatmul.mubr.f32.gmra.mrb[0].mxu0 %v1806
    %v1977 = vpop.f32.mrb[0].mxu0
    %v1978 = vadd.f32 0.0, %v1977
    %v1979 = vpop.f32.mrb[0].mxu0
    %1980 = vmatprep.mubr.f32.mxu0 0.0
    %1981 = vmatmul.mubr.f32.gmra.mrb[0].mxu0 %v1809
    %v1982 = vpop.f32.mrb[0].mxu0
    %v1983 = vadd.f32 0.0, %v1982
    %v1984 = vpop.f32.mrb[0].mxu0
    %1985 = vmatprep.mubr.f32.mxu0 0.0
    %1986 = vmatmul.mubr.f32.gmra.mrb[0].mxu0 %v1812
    %v1987 = vpop.f32.mrb[0].mxu0
    %v1988 = vadd.f32 0.0, %v1987
    %v1989 = vpop.f32.mrb[0].mxu0
    %1990 = vmatprep.mubr.f32.mxu0 0.0
    %1991 = vmatmul.mubr.f32.gmra.mrb[0].mxu0 %v1815
    %v1992 = vpop.f32.mrb[0].mxu0
    %v1993 = vadd.f32 0.0, %v1992
    %v1994 = vpop.f32.mrb[0].mxu0
    %1995 = vmatprep.mubr.f32.mxu0 0.0
    %1996 = vmatmul.mubr.f32.gmra.mrb[0].mxu0 %v1818
    %v1997 = vpop.f32.mrb[0].mxu0
    %v1998 = vadd.f32 0.0, %v1997
    %v1999 = vpop.f32.mrb[0].mxu0
    %2000 = vmatprep.mubr.f32.mxu0 0.0
    %2001 = vmatmul.mubr.f32.gmra.mrb[0].mxu0 %v1821
    %v2002 = vpop.f32.mrb[0].mxu0
    %v2003 = vadd.f32 0.0, %v2002
    %v2004 = vpop.f32.mrb[0].mxu0
    %2005 = vmatprep.mubr.f32.mxu0 0.0
    %2006 = vmatmul.mubr.f32.gmra.mrb[0].mxu0 %v1824
    %v2007 = vpop.f32.mrb[0].mxu0
    %v2008 = vadd.f32 0.0, %v2007
    %v2009 = vpop.f32.mrb[0].mxu0
    %2010 = vdwg.mxu0
    %2011 = vmatprep.subr.mxu0 0.0
    %2012 = vmatpush1.msra.mxu0 %v1893
    %2013 = vmatprep.subr.mxu0 0.0
    %2014 = vmatpush1.msra.mxu0 %v1898
    %2015 = vmatprep.subr.mxu0 0.0
    %2016 = vmatpush1.msra.mxu0 %v1903
    %2017 = vmatprep.subr.mxu0 0.0
    %2018 = vmatpush1.msra.mxu0 %v1908
    %2019 = vmatprep.subr.mxu0 0.0
    %2020 = vmatpush1.msra.mxu0 %v1913
    %2021 = vmatprep.subr.mxu0 0.0
    %2022 = vmatpush1.msra.mxu0 %v1918
    %2023 = vmatprep.subr.mxu0 0.0
    %2024 = vmatpush1.msra.mxu0 %v1923
    %2025 = vmatprep.subr.mxu0 0.0
    %2026 = vmatpush1.msra.mxu0 %v1928
    %2027 = vmatprep.subr.mxu0 0.0
    %2028 = vmatpush1.msra.mxu0 %v1933
    %2029 = vmatprep.subr.mxu0 0.0
    %2030 = vmatpush1.msra.mxu0 %v1938
    %2031 = vmatprep.subr.mxu0 0.0
    %2032 = vmatpush1.msra.mxu0 %v1943
    %2033 = vmatprep.subr.mxu0 0.0
    %2034 = vmatpush1.msra.mxu0 %v1948
    %2035 = vmatprep.subr.mxu0 0.0
    %2036 = vmatpush1.msra.mxu0 %v1953
    %2037 = vmatprep.subr.mxu0 0.0
    %2038 = vmatpush1.msra.mxu0 %v1958
    %2039 = vmatprep.subr.mxu0 0.0
    %2040 = vmatpush1.msra.mxu0 %v1963
    %2041 = vmatprep.subr.mxu0 0.0
    %2042 = vmatpush1.msra.mxu0 %v1968
    %2043 = vmatprep.subr.mxu0 0.0
    %2044 = vmatpush1.msra.mxu0 %v1973
    %2045 = vmatprep.subr.mxu0 0.0
    %2046 = vmatpush1.msra.mxu0 %v1978
    %2047 = vmatprep.subr.mxu0 0.0
    %2048 = vmatpush1.msra.mxu0 %v1983
    %2049 = vmatprep.subr.mxu0 0.0
    %2050 = vmatpush1.msra.mxu0 %v1988
    %2051 = vmatprep.subr.mxu0 0.0
    %2052 = vmatpush1.msra.mxu0 %v1993
    %2053 = vmatprep.subr.mxu0 0.0
    %2054 = vmatpush1.msra.mxu0 %v1998
    %2055 = vmatprep.subr.mxu0 0.0
    %2056 = vmatpush1.msra.mxu0 %v2003
    %2057 = vmatprep.subr.mxu0 0.0
    %2058 = vmatpush1.msra.mxu0 %v2008
    %2059 = vmatprep.subr.mxu0 0.0
    %2060 = vmatpush1.msra.mxu0 0.0
    %2061 = vmatprep.subr.mxu0 0.0
    %2062 = vmatpush1.msra.mxu0 0.0
    %2063 = vmatprep.subr.mxu0 0.0
    %2064 = vmatpush1.msra.mxu0 0.0
    %2065 = vmatprep.subr.mxu0 0.0
    %2066 = vmatpush1.msra.mxu0 0.0
    %2067 = vmatprep.subr.mxu0 0.0
    %2068 = vmatpush1.msra.mxu0 0.0
    %2069 = vmatprep.subr.mxu0 0.0
    %2070 = vmatpush1.msra.mxu0 0.0
    %2071 = vmatprep.subr.mxu0 0.0
    %2072 = vmatpush1.msra.mxu0 0.0
    %2073 = vmatprep.subr.mxu0 0.0
    %2074 = vmatpush1.msra.mxu0 0.0
    %2075 = vmatprep.mubr.f32.mxu0 %v376
    %2076 = vmatmul.mubr.f32.gmra.mrb[0].mxu0 %v40
    %v2077 = vpop.f32.mrb[0].mxu0
    %v2078 = vadd.f32 0.0, %v2077
    %v2079 = vpop.f32.mrb[0].mxu0
    %2080 = vmatprep.mubr.f32.mxu0 %v379
    %2081 = vmatmul.mubr.f32.gmra.mrb[0].mxu0 %v42
    %v2082 = vpop.f32.mrb[0].mxu0
    %v2083 = vadd.f32 0.0, %v2082
    %v2084 = vpop.f32.mrb[0].mxu0
    %2085 = vmatprep.mubr.f32.mxu0 %v382
    %2086 = vmatmul.mubr.f32.gmra.mrb[0].mxu0 %v44
    %v2087 = vpop.f32.mrb[0].mxu0
    %v2088 = vadd.f32 0.0, %v2087
    %v2089 = vpop.f32.mrb[0].mxu0
    %2090 = vmatprep.mubr.f32.mxu0 %v385
    %2091 = vmatmul.mubr.f32.gmra.mrb[0].mxu0 %v46
    %v2092 = vpop.f32.mrb[0].mxu0
    %v2093 = vadd.f32 0.0, %v2092
    %v2094 = vpop.f32.mrb[0].mxu0
    %2095 = vmatprep.mubr.f32.mxu0 %v388
    %2096 = vmatmul.mubr.f32.gmra.mrb[0].mxu0 %v48
    %v2097 = vpop.f32.mrb[0].mxu0
    %v2098 = vadd.f32 0.0, %v2097
    %v2099 = vpop.f32.mrb[0].mxu0
    %2100 = vmatprep.mubr.f32.mxu0 %v391
    %2101 = vmatmul.mubr.f32.gmra.mrb[0].mxu0 %v50
    %v2102 = vpop.f32.mrb[0].mxu0
    %v2103 = vadd.f32 0.0, %v2102
    %v2104 = vpop.f32.mrb[0].mxu0
    %2105 = vmatprep.mubr.f32.mxu0 %v394
    %2106 = vmatmul.mubr.f32.gmra.mrb[0].mxu0 %v52
    %v2107 = vpop.f32.mrb[0].mxu0
    %v2108 = vadd.f32 0.0, %v2107
    %v2109 = vpop.f32.mrb[0].mxu0
    %2110 = vmatprep.mubr.f32.mxu0 %v397
    %2111 = vmatmul.mubr.f32.gmra.mrb[0].mxu0 %v54
    %v2112 = vpop.f32.mrb[0].mxu0
    %v2113 = vadd.f32 0.0, %v2112
    %v2114 = vpop.f32.mrb[0].mxu0
    %2115 = vmatprep.mubr.f32.mxu0 %v400
    %2116 = vmatmul.mubr.f32.gmra.mrb[0].mxu0 %v56
    %v2117 = vpop.f32.mrb[0].mxu0
    %v2118 = vadd.f32 0.0, %v2117
    %v2119 = vpop.f32.mrb[0].mxu0
    %2120 = vmatprep.mubr.f32.mxu0 %v403
    %2121 = vmatmul.mubr.f32.gmra.mrb[0].mxu0 %v58
    %v2122 = vpop.f32.mrb[0].mxu0
    %v2123 = vadd.f32 0.0, %v2122
    %v2124 = vpop.f32.mrb[0].mxu0
    %2125 = vmatprep.mubr.f32.mxu0 %v406
    %2126 = vmatmul.mubr.f32.gmra.mrb[0].mxu0 %v60
    %v2127 = vpop.f32.mrb[0].mxu0
    %v2128 = vadd.f32 0.0, %v2127
    %v2129 = vpop.f32.mrb[0].mxu0
    %2130 = vmatprep.mubr.f32.mxu0 %v409
    %2131 = vmatmul.mubr.f32.gmra.mrb[0].mxu0 %v62
    %v2132 = vpop.f32.mrb[0].mxu0
    %v2133 = vadd.f32 0.0, %v2132
    %v2134 = vpop.f32.mrb[0].mxu0
    %2135 = vdwg.mxu0
    %v2136 = vmul.f32 %v478, %v478
    %v2137 = vmul.f32 %v483, %v483
    %v2138 = vmul.f32 %v488, %v488
    %v2139 = vmul.f32 %v493, %v493
    %v2140 = vmul.f32 %v498, %v498
    %v2141 = vmul.f32 %v503, %v503
    %v2142 = vmul.f32 %v508, %v508
    %v2143 = vmul.f32 %v513, %v513
    %v2144 = vmul.f32 %v518, %v518
    %v2145 = vmul.f32 %v523, %v523
    %v2146 = vmul.f32 %v528, %v528
    %v2147 = vmul.f32 %v533, %v533
    %v2148 = vmul.f32 %v860, %v860
    %v2149 = vmul.f32 %v865, %v865
    %v2150 = vmul.f32 %v870, %v870
    %v2151 = vmul.f32 %v875, %v875
    %v2152 = vmul.f32 %v880, %v880
    %v2153 = vmul.f32 %v885, %v885
    %v2154 = vmul.f32 %v890, %v890
    %v2155 = vmul.f32 %v895, %v895
    %v2156 = vmul.f32 %v900, %v900
    %v2157 = vmul.f32 %v905, %v905
    %v2158 = vmul.f32 %v910, %v910
    %v2159 = vmul.f32 %v915, %v915
    %v2160 = vmul.f32 %v478, %v860
    %v2161 = vmul.f32 %v483, %v865
    %v2162 = vmul.f32 %v488, %v870
    %v2163 = vmul.f32 %v493, %v875
    %v2164 = vmul.f32 %v498, %v880
    %v2165 = vmul.f32 %v503, %v885
    %v2166 = vmul.f32 %v508, %v890
    %v2167 = vmul.f32 %v513, %v895
    %v2168 = vmul.f32 %v518, %v900
    %v2169 = vmul.f32 %v523, %v905
    %v2170 = vmul.f32 %v528, %v910
    %v2171 = vmul.f32 %v533, %v915
    %v2172 = vsub.f32 %v1266, %v2136
    %v2173 = vsub.f32 %v1271, %v2137
    %v2174 = vsub.f32 %v1276, %v2138
    %v2175 = vsub.f32 %v1281, %v2139
    %v2176 = vsub.f32 %v1286, %v2140
    %v2177 = vsub.f32 %v1291, %v2141
    %v2178 = vsub.f32 %v1296, %v2142
    %v2179 = vsub.f32 %v1301, %v2143
    %v2180 = vsub.f32 %v1306, %v2144
    %v2181 = vsub.f32 %v1311, %v2145
    %v2182 = vsub.f32 %v1316, %v2146
    %v2183 = vsub.f32 %v1321, %v2147
    %v2184 = vsub.f32 %v1672, %v2148
    %v2185 = vsub.f32 %v1677, %v2149
    %v2186 = vsub.f32 %v1682, %v2150
    %v2187 = vsub.f32 %v1687, %v2151
    %v2188 = vsub.f32 %v1692, %v2152
    %v2189 = vsub.f32 %v1697, %v2153
    %v2190 = vsub.f32 %v1702, %v2154
    %v2191 = vsub.f32 %v1707, %v2155
    %v2192 = vsub.f32 %v1712, %v2156
    %v2193 = vsub.f32 %v1717, %v2157
    %v2194 = vsub.f32 %v1722, %v2158
    %v2195 = vsub.f32 %v1727, %v2159
    %v2196 = vsub.f32 %v2078, %v2160
    %v2197 = vsub.f32 %v2083, %v2161
    %v2198 = vsub.f32 %v2088, %v2162
    %v2199 = vsub.f32 %v2093, %v2163
    %v2200 = vsub.f32 %v2098, %v2164
    %v2201 = vsub.f32 %v2103, %v2165
    %v2202 = vsub.f32 %v2108, %v2166
    %v2203 = vsub.f32 %v2113, %v2167
    %v2204 = vsub.f32 %v2118, %v2168
    %v2205 = vsub.f32 %v2123, %v2169
    %v2206 = vsub.f32 %v2128, %v2170
    %v2207 = vsub.f32 %v2133, %v2171
    %v2208 = vmul.f32 %v2196, 2.0
    %v2209 = vmul.f32 %v2197, 2.0
    %v2210 = vmul.f32 %v2198, 2.0
    %v2211 = vmul.f32 %v2199, 2.0
    %v2212 = vmul.f32 %v2200, 2.0
    %v2213 = vmul.f32 %v2201, 2.0
    %v2214 = vmul.f32 %v2202, 2.0
    %v2215 = vmul.f32 %v2203, 2.0
    %v2216 = vmul.f32 %v2204, 2.0
    %v2217 = vmul.f32 %v2205, 2.0
    %v2218 = vmul.f32 %v2206, 2.0
    %v2219 = vmul.f32 %v2207, 2.0
    %v2220 = vstv %s35
    %v2221 = vadd.f32 %v2208, %v2220
    %v2222 = vadd.f32 %v2209, %v2220
    %v2223 = vadd.f32 %v2210, %v2220
    %v2224 = vadd.f32 %v2211, %v2220
    %v2225 = vadd.f32 %v2212, %v2220
    %v2226 = vadd.f32 %v2213, %v2220
    %v2227 = vadd.f32 %v2214, %v2220
    %v2228 = vadd.f32 %v2215, %v2220
    %v2229 = vadd.f32 %v2216, %v2220
    %v2230 = vadd.f32 %v2217, %v2220
    %v2231 = vadd.f32 %v2218, %v2220
    %v2232 = vadd.f32 %v2219, %v2220
    %v2233 = vadd.f32 %v2172, %v2184
    %v2234 = vadd.f32 %v2173, %v2185
    %v2235 = vadd.f32 %v2174, %v2186
    %v2236 = vadd.f32 %v2175, %v2187
    %v2237 = vadd.f32 %v2176, %v2188
    %v2238 = vadd.f32 %v2177, %v2189
    %v2239 = vadd.f32 %v2178, %v2190
    %v2240 = vadd.f32 %v2179, %v2191
    %v2241 = vadd.f32 %v2180, %v2192
    %v2242 = vadd.f32 %v2181, %v2193
    %v2243 = vadd.f32 %v2182, %v2194
    %v2244 = vadd.f32 %v2183, %v2195
    %v2245 = vadd.f32 %v2233, %v2220
    %v2246 = vadd.f32 %v2234, %v2220
    %v2247 = vadd.f32 %v2235, %v2220
    %v2248 = vadd.f32 %v2236, %v2220
    %v2249 = vadd.f32 %v2237, %v2220
    %v2250 = vadd.f32 %v2238, %v2220
    %v2251 = vadd.f32 %v2239, %v2220
    %v2252 = vadd.f32 %v2240, %v2220
    %v2253 = vadd.f32 %v2241, %v2220
    %v2254 = vadd.f32 %v2242, %v2220
    %v2255 = vadd.f32 %v2243, %v2220
    %v2256 = vadd.f32 %v2244, %v2220
    %v2257 = vmul.f32 %v2160, 2.0
    %v2258 = vmul.f32 %v2161, 2.0
    %v2259 = vmul.f32 %v2162, 2.0
    %v2260 = vmul.f32 %v2163, 2.0
    %v2261 = vmul.f32 %v2164, 2.0
    %v2262 = vmul.f32 %v2165, 2.0
    %v2263 = vmul.f32 %v2166, 2.0
    %v2264 = vmul.f32 %v2167, 2.0
    %v2265 = vmul.f32 %v2168, 2.0
    %v2266 = vmul.f32 %v2169, 2.0
    %v2267 = vmul.f32 %v2170, 2.0
    %v2268 = vmul.f32 %v2171, 2.0
    %v2269 = vstv %s34
    %v2270 = vadd.f32 %v2257, %v2269
    %v2271 = vadd.f32 %v2258, %v2269
    %v2272 = vadd.f32 %v2259, %v2269
    %v2273 = vadd.f32 %v2260, %v2269
    %v2274 = vadd.f32 %v2261, %v2269
    %v2275 = vadd.f32 %v2262, %v2269
    %v2276 = vadd.f32 %v2263, %v2269
    %v2277 = vadd.f32 %v2264, %v2269
    %v2278 = vadd.f32 %v2265, %v2269
    %v2279 = vadd.f32 %v2266, %v2269
    %v2280 = vadd.f32 %v2267, %v2269
    %v2281 = vadd.f32 %v2268, %v2269
    %v2282 = vmul.f32 %v2270, %v2221
    %v2283 = vmul.f32 %v2271, %v2222
    %v2284 = vmul.f32 %v2272, %v2223
    %v2285 = vmul.f32 %v2273, %v2224
    %v2286 = vmul.f32 %v2274, %v2225
    %v2287 = vmul.f32 %v2275, %v2226
    %v2288 = vmul.f32 %v2276, %v2227
    %v2289 = vmul.f32 %v2277, %v2228
    %v2290 = vmul.f32 %v2278, %v2229
    %v2291 = vmul.f32 %v2279, %v2230
    %v2292 = vmul.f32 %v2280, %v2231
    %v2293 = vmul.f32 %v2281, %v2232
    %v2294 = vadd.f32 %v2136, %v2148
    %v2295 = vadd.f32 %v2137, %v2149
    %v2296 = vadd.f32 %v2138, %v2150
    %v2297 = vadd.f32 %v2139, %v2151
    %v2298 = vadd.f32 %v2140, %v2152
    %v2299 = vadd.f32 %v2141, %v2153
    %v2300 = vadd.f32 %v2142, %v2154
    %v2301 = vadd.f32 %v2143, %v2155
    %v2302 = vadd.f32 %v2144, %v2156
    %v2303 = vadd.f32 %v2145, %v2157
    %v2304 = vadd.f32 %v2146, %v2158
    %v2305 = vadd.f32 %v2147, %v2159
    %v2306 = vadd.f32 %v2294, %v2269
    %v2307 = vadd.f32 %v2295, %v2269
    %v2308 = vadd.f32 %v2296, %v2269
    %v2309 = vadd.f32 %v2297, %v2269
    %v2310 = vadd.f32 %v2298, %v2269
    %v2311 = vadd.f32 %v2299, %v2269
    %v2312 = vadd.f32 %v2300, %v2269
    %v2313 = vadd.f32 %v2301, %v2269
    %v2314 = vadd.f32 %v2302, %v2269
    %v2315 = vadd.f32 %v2303, %v2269
    %v2316 = vadd.f32 %v2304, %v2269
    %v2317 = vadd.f32 %v2305, %v2269
    %v2318 = vmul.f32 %v2306, %v2245
    %v2319 = vmul.f32 %v2307, %v2246
    %v2320 = vmul.f32 %v2308, %v2247
    %v2321 = vmul.f32 %v2309, %v2248
    %v2322 = vmul.f32 %v2310, %v2249
    %v2323 = vmul.f32 %v2311, %v2250
    %v2324 = vmul.f32 %v2312, %v2251
    %v2325 = vmul.f32 %v2313, %v2252
    %v2326 = vmul.f32 %v2314, %v2253
    %v2327 = vmul.f32 %v2315, %v2254
    %v2328 = vmul.f32 %v2316, %v2255
    %v2329 = vmul.f32 %v2317, %v2256
    %v2330 = vrcp.pop %v2318
    %v2331 = vmul.f32 %v2282, %v2330
    %v2332 = vrcp.pop %v2319
    %v2333 = vmul.f32 %v2283, %v2332
    %v2334 = vrcp.pop %v2320
    %v2335 = vmul.f32 %v2284, %v2334
    %v2336 = vrcp.pop %v2321
    %v2337 = vmul.f32 %v2285, %v2336
    %v2338 = vrcp.pop %v2322
    %v2339 = vmul.f32 %v2286, %v2338
    %v2340 = vrcp.pop %v2323
    %v2341 = vmul.f32 %v2287, %v2340
    %v2342 = vrcp.pop %v2324
    %v2343 = vmul.f32 %v2288, %v2342
    %v2344 = vrcp.pop %v2325
    %v2345 = vmul.f32 %v2289, %v2344
    %v2346 = vrcp.pop %v2326
    %v2347 = vmul.f32 %v2290, %v2346
    %v2348 = vrcp.pop %v2327
    %v2349 = vmul.f32 %v2291, %v2348
    %v2350 = vrcp.pop %v2328
    %v2351 = vmul.f32 %v2292, %v2350
    %v2352 = vrcp.pop %v2329
    %v2353 = vmul.f32 %v2293, %v2352
    %v2354 = vlaneseq
    %v2355 = vshrl.u32 %v2354, 7
    %v2356 = vadd.s32 %v2355, 8
    %v2357 = vadd.s32 %v2355, 16
    %v2358 = vadd.s32 %v2355, 24
    %v2359 = vadd.s32 %v2355, 32
    %v2360 = vadd.s32 %v2355, 40
    %v2361 = vadd.s32 %v2355, 48
    %v2362 = vadd.s32 %v2355, 56
    %v2363 = vadd.s32 %v2355, 64
    %v2364 = vadd.s32 %v2355, 72
    %v2365 = vadd.s32 %v2355, 80
    %v2366 = vadd.s32 %v2355, 88
    %s2367 = smul.u32 0, 96
    %v2368 = vstv %s2367
    %v2369 = vadd.s32 %v2368, %v2355
    %v2370 = vadd.s32 %v2368, %v2356
    %v2371 = vadd.s32 %v2368, %v2357
    %v2372 = vadd.s32 %v2368, %v2358
    %v2373 = vadd.s32 %v2368, %v2359
    %v2374 = vadd.s32 %v2368, %v2360
    %v2375 = vadd.s32 %v2368, %v2361
    %v2376 = vadd.s32 %v2368, %v2362
    %v2377 = vadd.s32 %v2368, %v2363
    %v2378 = vadd.s32 %v2368, %v2364
    %v2379 = vadd.s32 %v2368, %v2365
    %v2380 = vadd.s32 %v2368, %v2366
    %vm2381 = vcmp.lt.s32.totalorder %v2369, 96
    %vm2382 = vcmp.lt.s32.totalorder %v2370, 96
    %vm2383 = vcmp.lt.s32.totalorder %v2371, 96
    %vm2384 = vcmp.lt.s32.totalorder %v2372, 96
    %vm2385 = vcmp.lt.s32.totalorder %v2373, 96
    %vm2386 = vcmp.lt.s32.totalorder %v2374, 96
    %vm2387 = vcmp.lt.s32.totalorder %v2375, 96
    %vm2388 = vcmp.lt.s32.totalorder %v2376, 96
    %vm2389 = vcmp.lt.s32.totalorder %v2377, 96
    %vm2390 = vcmp.lt.s32.totalorder %v2378, 96
    %vm2391 = vcmp.lt.s32.totalorder %v2379, 96
    %vm2392 = vcmp.lt.s32.totalorder %v2380, 96
    %v2393 = vsel %vm2381, %v2331, 0.0
    %v2394 = vsel %vm2382, %v2333, 0.0
    %v2395 = vsel %vm2383, %v2335, 0.0
    %v2396 = vsel %vm2384, %v2337, 0.0
    %v2397 = vsel %vm2385, %v2339, 0.0
    %v2398 = vsel %vm2386, %v2341, 0.0
    %v2399 = vsel %vm2387, %v2343, 0.0
    %v2400 = vsel %vm2388, %v2345, 0.0
    %v2401 = vsel %vm2389, %v2347, 0.0
    %v2402 = vsel %vm2390, %v2349, 0.0
    %v2403 = vsel %vm2391, %v2351, 0.0
    %v2404 = vsel %vm2392, %v2353, 0.0
    %vm2405 = vcmask 130048
    %v2406 = vsel %vm2405, %v2393, 0.0
    %v2407 = vsel %vm2405, %v2394, 0.0
    %v2408 = vadd.f32 %v2406, %v2407
    %v2409 = vsel %vm2405, %v2395, 0.0
    %v2410 = vadd.f32 %v2408, %v2409
    %v2411 = vsel %vm2405, %v2396, 0.0
    %v2412 = vadd.f32 %v2410, %v2411
    %v2413 = vsel %vm2405, %v2397, 0.0
    %v2414 = vadd.f32 %v2412, %v2413
    %v2415 = vsel %vm2405, %v2398, 0.0
    %v2416 = vadd.f32 %v2414, %v2415
    %v2417 = vsel %vm2405, %v2399, 0.0
    %v2418 = vadd.f32 %v2416, %v2417
    %v2419 = vsel %vm2405, %v2400, 0.0
    %v2420 = vadd.f32 %v2418, %v2419
    %v2421 = vsel %vm2405, %v2401, 0.0
    %v2422 = vadd.f32 %v2420, %v2421
    %v2423 = vsel %vm2405, %v2402, 0.0
    %v2424 = vadd.f32 %v2422, %v2423
    %v2425 = vsel %vm2405, %v2403, 0.0
    %v2426 = vadd.f32 %v2424, %v2425
    %v2427 = vsel %vm2405, %v2404, 0.0
    %v2428 = vadd.f32 %v2426, %v2427
    %2429 = vadd.xlane.f32.xlu0 %v2428
    %v2430 = vpop.xlane.xlu0 %2429
    %v2431 = vrot.slane %v2430, 4
    %v2432 = vadd.f32 %v2430, %v2431
    %v2433 = vrot.slane %v2432, 2
    %v2434 = vadd.f32 %v2432, %v2433
    %v2435 = vrot.slane %v2434, 1
    %v2436 = vadd.f32 %v2434, %v2435
    %s2437 = vtos %v2436
    %v2438 = vstv %s2437
    %2439 = vst [vmem:[#allocation5] sm:$0xff] %v2438
    // Predicated region
    $region26: #{tpu_custom_call.1} parent=1 // pred_check
      _
    $region27: #{tpu_custom_call.1} parent=1 // pred_check_branch
      %2441 = sbr.rel (0) target = $region29
    $region28: #{tpu_custom_call.1} parent=1 // pred_region
      %s2443 = ssub.s32 128, 128
      %2444 = vsyncadd [#allocation3], %s2443
      %s2446 = sshll.u32 [#allocation5], 4
      %s2447 = int_to_ptr.vmem [resolvable:$true] %s2446
      %2449 = dma.vmem_to_hbm [thread:$0]  %s2447, 128, %s5, [#allocation3]
    $region29: #{tpu_custom_call.1} parent=1 // pred_fallthru
      _
    // Predicated region
    $region30: #{tpu_custom_call.1} parent=1 // pred_check
      _
    $region31: #{tpu_custom_call.1} parent=1 // pred_check_branch
      %2451 = sbr.rel (0) target = $region33
    $region32: #{tpu_custom_call.1} parent=1 // pred_region
      %2452 = dma.done [#allocation3], 128
    $region33: #{tpu_custom_call.1} parent=1 // pred_fallthru
      _
    %2453 = vsyncpa [#allocation3], 1
    %2454 = vsyncpa [#allocation4], 1

</llo_original>
